<compile_context>
chip_gen: v5e
topology: v5e:2x2
jax: 0.10.0
libtpu: 0.0.40
codegen_flags: <defaults>
</compile_context>

<pallas_src>
import math

import numpy as np
import jax
import jax.numpy as jnp
from jax.experimental import pallas as pl
from jax.experimental.pallas import tpu as pltpu

# ----------------------------- model dimensions -----------------------------
B = 2        # batch
CIN = 4      # latent channels (UNet in/out channels)
H = W = 16   # latent spatial size
CM = 32      # model / attention width
L = 8        # context sequence length
DCTX = 32    # context embedding dim
DCTX_AUG = 36            # ctx + ones column (folds b_k/b_v), padded to 36

# ------------------------- fused-kernel token layout -------------------------
HP, WP = H + 2, W + 2    # zero-padded image (padding=1 convs)
P_RAW = HP * WP          # 324 flattened padded-image positions
NTOK = 384               # token lanes carried in-kernel (3 * 128, lane dense)
NCOL_IN = 9 * CIN        # 36  im2col columns for conv_in
NCOL_OUT = 9 * CM        # 288 im2col rows for conv_out
MAX_OFF = 19             # largest |tap offset|
SCALE = 1.0 / math.sqrt(CM)
# 3x3 tap offsets in flattened padded-image coordinates, tap = kh*3 + kw
TAP_OFFSETS = tuple((kh - 1) * WP + (kw - 1) for kh in range(3) for kw in range(3))


# ------------------------------ fused UNet kernel ----------------------------
def _fused_unet_kernel(xcol_ref, temb_ref, ctxk_ref, ctxv_ref, mask_ref,
                       wp36_ref, wp32_ref, wco_ref, bias_ref,
                       out_ref, hcol_ref):
    f32, bf16 = jnp.float32, jnp.bfloat16

    # ---- conv_in: ONE im2col matmul (channel-major); epilogue: +temb, SiLU ----
    # temb already contains b_conv_in (folded in the wrapper).
    h = jnp.dot(wp36_ref[0:CM, :], xcol_ref[0], preferred_element_type=f32)
    h = h + temb_ref[0]                       # (CM, 1) lane-broadcast
    h = h * jax.nn.sigmoid(h)                 # SiLU                (CM, NTOK)

    # ---- cross-attention with lane-dense (L, NTOK) scores ----
    hb = h.astype(bf16)
    # attention scale is pre-folded into w_q / b_q in the wrapper.
    qT = jnp.dot(wp32_ref[0:CM, :], hb, preferred_element_type=f32) + bias_ref[:, 0:1]
    k = jnp.dot(ctxk_ref[0], wp32_ref[2 * CM:2 * CM + DCTX_AUG, :],
                preferred_element_type=f32)                           # (L, CM)
    vT = jnp.dot(wp36_ref[CM:2 * CM, :], ctxv_ref[0],
                 preferred_element_type=f32)                          # (CM, L)
    s = jnp.dot(k.astype(bf16), qT.astype(bf16),
                preferred_element_type=f32)                           # (L, NTOK)
    m = jnp.max(s, axis=0, keepdims=True)
    p = jnp.exp(s - m)
    den = jnp.sum(p, axis=0, keepdims=True)
    # EUP approximate reciprocal + one Newton step (keeps the divide off the VPU)
    inv = pl.reciprocal(den, approx=True)
    inv = inv * (2.0 - den * inv)
    p = (p * inv).astype(bf16)
    aT = jnp.dot(vT.astype(bf16), p, preferred_element_type=f32)      # (CM, NTOK)
    # fused epilogue: output projection + bias + residual add
    h = (h + jnp.dot(wp32_ref[CM:2 * CM, :], aT.astype(bf16),
                     preferred_element_type=f32) + bias_ref[:, 1:2])

    # ---- conv_out: build the channel-major im2col in VMEM (9 shifted stores
    #      of the masked activations), then ONE (CIN,288)@(288,NTOK) matmul.
    #      The only HBM store is lane-dense (CIN, 384). ----
    hm = (h * mask_ref[...]).astype(bf16)     # zero padding / filler tokens
    # Columns never covered by the shifted stores only feed discarded output
    # tokens; zero them anyway so the scratch stays deterministic.
    hcol_ref[:, 0:MAX_OFF + 5] = jnp.zeros((NCOL_OUT, MAX_OFF + 5), bf16)
    hcol_ref[:, NTOK - MAX_OFF - 5:NTOK] = jnp.zeros((NCOL_OUT, MAX_OFF + 5), bf16)
    for tap, off in enumerate(TAP_OFFSETS):
        c0 = max(0, -off)
        c1 = NTOK - max(0, off)
        hcol_ref[tap * CM:(tap + 1) * CM, c0:c1] = hm[:, c0 + off:c1 + off]
    out_ref[0] = jnp.dot(wco_ref[...], hcol_ref[...], preferred_element_type=f32)


# ------------------------------ JAX glue helpers -----------------------------
def timestep_embedding(t, dim):
    half = dim // 2
    freqs = jnp.exp(-math.log(10000.0) *
                    jnp.arange(half, dtype=jnp.float32) / half)
    args = t.astype(jnp.float32)[:, None] * freqs[None, :]
    return jnp.concatenate([jnp.cos(args), jnp.sin(args)], axis=-1)


def _interior_mask():
    """(1, NTOK) float mask: 1 on true image pixels, 0 on padding/filler tokens."""
    qi = np.arange(NTOK)
    r, c = qi // WP, qi % WP
    m = (qi < P_RAW) & (r >= 1) & (r <= H) & (c >= 1) & (c <= W)
    return jnp.asarray(m.astype(np.float32)).reshape(1, NTOK)


# ------------------------------ UNet forward ---------------------------------
def unet_forward(params, x_nchw, t, context):
    Bn = x_nchw.shape[0]
    f32, bf16 = jnp.float32, jnp.bfloat16

    # -- conv_in im2col slab (channel-major, 384 token lanes), built by XLA --
    x = jnp.transpose(x_nchw, (0, 2, 3, 1))                      # (B, H, W, CIN)
    xp = jnp.pad(x, ((0, 0), (1, 1), (1, 1), (0, 0)))            # (B, HP, WP, CIN)
    xf = xp.reshape(Bn, P_RAW, CIN)
    xe = jnp.pad(xf, ((0, 0), (MAX_OFF, MAX_OFF + NTOK - P_RAW), (0, 0)))
    x_col = jnp.concatenate(
        [xe[:, MAX_OFF + off:MAX_OFF + off + NTOK, :] for off in TAP_OFFSETS],
        axis=-1)                                                 # (B, NTOK, 36)
    x_colT = jnp.transpose(x_col, (0, 2, 1)).astype(bf16)        # (B, 36, NTOK)

    # -- time-embedding MLP (M=1 matmuls) done by XLA; conv_in bias folded in --
    sin = timestep_embedding(t, CM)
    temb = jax.nn.silu(sin @ params["w_t1"] + params["b_t1"])
    temb = temb @ params["w_t2"] + params["b_t2"]
    temb_eff = (temb + params["b_conv_in"]).reshape(Bn, CM, 1).astype(f32)

    # -- context in both orientations; k/v biases folded via a ones column --
    pad_c = DCTX_AUG - DCTX - 1
    ctx_aug = jnp.concatenate(
        [context, jnp.ones((Bn, L, 1), f32), jnp.zeros((Bn, L, pad_c), f32)],
        axis=-1)                                                 # (B, L, 36)
    ctx_k = ctx_aug.astype(bf16)                                 # (B, L, 36)
    ctx_vT = jnp.transpose(ctx_aug, (0, 2, 1)).astype(bf16)      # (B, 36, L)

    # -- packed bf16 weights (attention scale folded into w_q) --
    w_inT = params["w_conv_in"].reshape(NCOL_IN, CM).T           # (32, 36)
    w_v_aug = jnp.concatenate([params["w_v"], params["b_v"][None, :]], axis=0)
    w_vT_aug = jnp.pad(w_v_aug.T, ((0, 0), (0, pad_c)))          # (32, 36)
    wp36 = jnp.concatenate([w_inT, w_vT_aug], axis=0).astype(bf16)       # (64, 36)

    w_qsT = (params["w_q"] * SCALE).T                            # (32, 32)
    w_oT = params["w_o"].T                                       # (32, 32)
    w_k_aug = jnp.concatenate(
        [params["w_k"], params["b_k"][None, :], jnp.zeros((pad_c, CM), f32)],
        axis=0)                                                  # (36, 32)
    wp32 = jnp.concatenate([w_qsT, w_oT, w_k_aug], axis=0).astype(bf16)  # (100, 32)

    wco = params["w_conv_out"].reshape(NCOL_OUT, CIN).T.astype(bf16)     # (4, 288)
    b_pack = jnp.stack([params["b_q"] * SCALE, params["b_o"]], axis=1)   # (32, 2)
    mask = _interior_mask()                                      # (1, NTOK)

    in_specs = [
        pl.BlockSpec((1, NCOL_IN, NTOK), lambda i: (i, 0, 0)),   # x im2col slab
        pl.BlockSpec((1, CM, 1), lambda i: (i, 0, 0)),           # temb (+b_conv_in)
        pl.BlockSpec((1, L, DCTX_AUG), lambda i: (i, 0, 0)),     # ctx (row-major)
        pl.BlockSpec((1, DCTX_AUG, L), lambda i: (i, 0, 0)),     # ctx (col-major)
        pl.BlockSpec((1, NTOK), lambda i: (0, 0)),               # interior mask
        pl.BlockSpec((2 * CM, NCOL_IN), lambda i: (0, 0)),       # [w_inT ; w_vT]
        pl.BlockSpec((3 * CM + 4, CM), lambda i: (0, 0)),        # [w_qT ; w_oT ; w_k]
        pl.BlockSpec((CIN, NCOL_OUT), lambda i: (0, 0)),         # conv_out weight
        pl.BlockSpec((CM, 2), lambda i: (0, 0)),                 # [b_q | b_o]
    ]

    out_pad = pl.pallas_call(
        _fused_unet_kernel,
        out_shape=jax.ShapeDtypeStruct((Bn, CIN, NTOK), jnp.float32),
        grid=(Bn,),
        in_specs=in_specs,
        out_specs=pl.BlockSpec((1, CIN, NTOK), lambda i: (i, 0, 0)),
        scratch_shapes=[pltpu.VMEM((NCOL_OUT, NTOK), jnp.bfloat16)],
        compiler_params=pltpu.CompilerParams(dimension_semantics=("parallel",)),
    )(x_colT, temb_eff, ctx_k, ctx_vT, mask, wp36, wp32, wco, b_pack)

    # conv_out bias added by XLA; strip padding / filler tokens (already NCHW-major).
    # TODO(synk): on single-TensorCore parts (v5e/v6e) the two samples could be
    # folded into one grid step (M=768 token lanes) to amortize stationary loads.
    out_pad = out_pad + params["b_conv_out"].reshape(1, CIN, 1)
    out = out_pad[:, :, :P_RAW].reshape(Bn, CIN, HP, WP)[:, :, 1:1 + H, 1:1 + W]
    return out


_unet_forward_jit = jax.jit(unet_forward)


# -------------------------- pure-JAX reference check -------------------------
def _im2col_3x3(x):
    Bn, Hh, Ww, C = x.shape
    xp = jnp.pad(x, ((0, 0), (1, 1), (1, 1), (0, 0)))
    cols = []
    for kh in range(3):
        for kw in range(3):
            cols.append(xp[:, kh:kh + Hh, kw:kw + Ww, :])
    cols = jnp.stack(cols, axis=3)
    return cols.reshape(Bn, Hh * Ww, 9 * C)


def unet_reference(params, x_nchw, t, context):
    x = jnp.transpose(x_nchw, (0, 2, 3, 1))
    Bn, Hh, Ww, Cin = x.shape
    temb = timestep_embedding(t, CM)
    temb = jax.nn.silu(temb @ params["w_t1"] + params["b_t1"])
    temb = temb @ params["w_t2"] + params["b_t2"]
    h = _im2col_3x3(x) @ params["w_conv_in"].reshape(9 * Cin, CM) + params["b_conv_in"]
    h = jax.nn.silu(h + temb[:, None, :])
    q = h @ params["w_q"] + params["b_q"]
    k = context @ params["w_k"] + params["b_k"]
    v = context @ params["w_v"] + params["b_v"]
    s = jnp.einsum("bnd,bld->bnl", q, k) / math.sqrt(CM)
    p = jax.nn.softmax(s, axis=-1)
    a = jnp.einsum("bnl,bld->bnd", p, v)
    h = h + (a @ params["w_o"] + params["b_o"])
    out = (_im2col_3x3(h.reshape(Bn, Hh, Ww, CM))
           @ params["w_conv_out"].reshape(9 * CM, Cin) + params["b_conv_out"])
    return jnp.transpose(out.reshape(Bn, Hh, Ww, Cin), (0, 3, 1, 2))


# ------------------------------ LatentDiffusion ------------------------------
class LatentDiffusion:
    """JAX/Pallas port of the PyTorch LatentDiffusion module (forward only)."""

    def __init__(self, unet_params, auto_encoder=None, context_embedder=None,
                 latent_scaling_factor=0.18215, n_steps=1000,
                 linear_start=1e-4, linear_end=2e-2):
        self.params = unet_params
        self.latent_scaling_factor = latent_scaling_factor
        self.n_steps = n_steps
        # Schedule computed in float64 then cast to float32, as in PyTorch.
        beta64 = np.linspace(linear_start, linear_end, n_steps, dtype=np.float64)
        self.beta = jnp.asarray(beta64.astype(np.float32))
        self.alpha_bar = jnp.asarray(np.cumprod(1.0 - beta64).astype(np.float32))
        # TODO(synk): first_stage_model (autoencoder) and cond_stage_model are
        # injected dependencies not used by forward(); not reproduced here.
        self.first_stage_model = auto_encoder
        self.cond_stage_model = context_embedder

    def forward(self, x, t, context):
        # DiffusionWrapper: forward simply calls the diffusion (UNet) model.
        return _unet_forward_jit(self.params, x, t, context)


def init_unet_params(key):
    ks = jax.random.split(key, 8)

    def dense(k, shape):
        fan_in = shape[0] if len(shape) == 2 else shape[0] * shape[1] * shape[2]
        return jax.random.normal(k, shape, jnp.float32) / math.sqrt(fan_in)

    return {
        "w_t1": dense(ks[0], (CM, CM)), "b_t1": jnp.zeros((CM,), jnp.float32),
        "w_t2": dense(ks[1], (CM, CM)), "b_t2": jnp.zeros((CM,), jnp.float32),
        "w_conv_in": dense(ks[2], (3, 3, CIN, CM)),
        "b_conv_in": jnp.zeros((CM,), jnp.float32),
        "w_q": dense(ks[3], (CM, CM)), "b_q": jnp.zeros((CM,), jnp.float32),
        "w_k": dense(ks[4], (DCTX, CM)), "b_k": jnp.zeros((CM,), jnp.float32),
        "w_v": dense(ks[5], (DCTX, CM)), "b_v": jnp.zeros((CM,), jnp.float32),
        "w_o": dense(ks[6], (CM, CM)), "b_o": jnp.zeros((CM,), jnp.float32),
        "w_conv_out": dense(ks[7], (3, 3, CM, CIN)),
        "b_conv_out": jnp.zeros((CIN,), jnp.float32),
    }


if __name__ == "__main__":
    key = jax.random.PRNGKey(0)
    kx, kc, kp = jax.random.split(key, 3)

    x = jax.random.normal(kx, (B, CIN, H, W), jnp.float32)   # NCHW like PyTorch
    t = jnp.array([10, 500], dtype=jnp.int32)
    context = jax.random.normal(kc, (B, L, DCTX), jnp.float32)

    params = init_unet_params(kp)
    model = LatentDiffusion(params, latent_scaling_factor=0.18215,
                            n_steps=1000, linear_start=1e-4, linear_end=2e-2)

    out = model.forward(x, t, context)
    out = jax.block_until_ready(out)

    ref = unet_reference(params, x, t, context)
    assert out.shape == x.shape and out.dtype == x.dtype
    # Relaxed tolerance: MXU operands are bf16 (f32 accumulation) and the softmax
    # uses the EUP approximate reciprocal (+1 Newton step); reference is pure f32.
    assert bool(jnp.allclose(out, ref, atol=1e-1, rtol=1e-1))

    print("KERNEL_OK")
</pallas_src>

<mosaic_0001>
module attributes {stable_mosaic.version = 11 : i64} {
  func.func @_fused_unet_kernel(%arg0: i32, %arg1: memref<1x36x384xbf16, #tpu.memory_space<vmem>>, %arg2: memref<1x32x1xf32, #tpu.memory_space<vmem>>, %arg3: memref<1x8x36xbf16, #tpu.memory_space<vmem>>, %arg4: memref<1x36x8xbf16, #tpu.memory_space<vmem>>, %arg5: memref<1x384xf32, #tpu.memory_space<vmem>>, %arg6: memref<64x36xbf16, #tpu.memory_space<vmem>>, %arg7: memref<100x32xbf16, #tpu.memory_space<vmem>>, %arg8: memref<4x288xbf16, #tpu.memory_space<vmem>>, %arg9: memref<32x2xf32, #tpu.memory_space<vmem>>, %arg10: memref<1x4x384xf32, #tpu.memory_space<vmem>>, %arg11: memref<288x384xbf16, #tpu.memory_space<vmem>>) attributes {dimension_semantics = [#tpu.dimension_semantics<parallel>], iteration_bounds = array<i64: 2>, scalar_prefetch = 0 : i64, scratch_operands = 1 : i64, tpu.core_type = #tpu.core_type<tc>, window_params = [{transform_indices = @transform_0, window_bounds = array<i64: 1, 36, 384>}, {transform_indices = @transform_1, window_bounds = array<i64: 1, 32, 1>}, {transform_indices = @transform_2, window_bounds = array<i64: 1, 8, 36>}, {transform_indices = @transform_3, window_bounds = array<i64: 1, 36, 8>}, {pipeline_mode = #tpu.pipeline_mode<synchronous>, transform_indices = @transform_4, window_bounds = array<i64: 1, 384>}, {pipeline_mode = #tpu.pipeline_mode<synchronous>, transform_indices = @transform_5, window_bounds = array<i64: 64, 36>}, {pipeline_mode = #tpu.pipeline_mode<synchronous>, transform_indices = @transform_6, window_bounds = array<i64: 100, 32>}, {pipeline_mode = #tpu.pipeline_mode<synchronous>, transform_indices = @transform_7, window_bounds = array<i64: 4, 288>}, {pipeline_mode = #tpu.pipeline_mode<synchronous>, transform_indices = @transform_8, window_bounds = array<i64: 32, 2>}, {transform_indices = @transform_9, window_bounds = array<i64: 1, 4, 384>}]} {
    %c0 = arith.constant 0 : index
    %c0_0 = arith.constant 0 : index
    %0 = vector.load %arg6[%c0, %c0_0] : memref<64x36xbf16, #tpu.memory_space<vmem>>, vector<32x36xbf16>
    %c0_1 = arith.constant 0 : index
    %c0_2 = arith.constant 0 : index
    %c0_3 = arith.constant 0 : index
    %1 = vector.load %arg1[%c0_1, %c0_2, %c0_3] : memref<1x36x384xbf16, #tpu.memory_space<vmem>>, vector<1x36x384xbf16>
    %2 = vector.shape_cast %1 : vector<1x36x384xbf16> to vector<36x384xbf16>
    %cst = arith.constant dense<0.000000e+00> : vector<32x384xf32>
    %3 = tpu.matmul %0, %2, %cst {dimension_numbers = #tpu.dot_dimension_numbers<[1], [0], [0], [1], [0, 0, 1, 1], [], []>} : vector<32x36xbf16>, vector<36x384xbf16>, vector<32x384xf32> -> vector<32x384xf32>
    %c0_4 = arith.constant 0 : index
    %c0_5 = arith.constant 0 : index
    %c0_6 = arith.constant 0 : index
    %4 = vector.load %arg2[%c0_4, %c0_5, %c0_6] : memref<1x32x1xf32, #tpu.memory_space<vmem>>, vector<1x32x1xf32>
    %5 = vector.shape_cast %4 : vector<1x32x1xf32> to vector<32x1xf32>
    %6 = vector.broadcast %5 : vector<32x1xf32> to vector<32x384xf32>
    %7 = arith.addf %3, %6 : vector<32x384xf32>
    %8 = arith.negf %7 : vector<32x384xf32>
    %9 = math.exp %8 : vector<32x384xf32>
    %cst_7 = arith.constant 1.000000e+00 : f32
    %10 = vector.broadcast %cst_7 : f32 to vector<32x384xf32>
    %11 = arith.addf %10, %9 : vector<32x384xf32>
    %12 = arith.divf %10, %11 : vector<32x384xf32>
    %13 = arith.mulf %7, %12 : vector<32x384xf32>
    %14 = arith.truncf %13 : vector<32x384xf32> to vector<32x384xbf16>
    %c0_8 = arith.constant 0 : index
    %c0_9 = arith.constant 0 : index
    %15 = vector.load %arg7[%c0_8, %c0_9] : memref<100x32xbf16, #tpu.memory_space<vmem>>, vector<32x32xbf16>
    %cst_10 = arith.constant dense<0.000000e+00> : vector<32x384xf32>
    %16 = tpu.matmul %15, %14, %cst_10 {dimension_numbers = #tpu.dot_dimension_numbers<[1], [0], [0], [1], [0, 0, 1, 1], [], []>} : vector<32x32xbf16>, vector<32x384xbf16>, vector<32x384xf32> -> vector<32x384xf32>
    %c0_11 = arith.constant 0 : index
    %c0_12 = arith.constant 0 : index
    %17 = vector.load %arg9[%c0_11, %c0_12] : memref<32x2xf32, #tpu.memory_space<vmem>>, vector<32x1xf32>
    %18 = vector.broadcast %17 : vector<32x1xf32> to vector<32x384xf32>
    %19 = arith.addf %16, %18 : vector<32x384xf32>
    %c0_13 = arith.constant 0 : index
    %c0_14 = arith.constant 0 : index
    %c0_15 = arith.constant 0 : index
    %20 = vector.load %arg3[%c0_13, %c0_14, %c0_15] : memref<1x8x36xbf16, #tpu.memory_space<vmem>>, vector<1x8x36xbf16>
    %21 = vector.shape_cast %20 : vector<1x8x36xbf16> to vector<8x36xbf16>
    %c64 = arith.constant 64 : index
    %c0_16 = arith.constant 0 : index
    %22 = vector.load %arg7[%c64, %c0_16] : memref<100x32xbf16, #tpu.memory_space<vmem>>, vector<36x32xbf16>
    %cst_17 = arith.constant dense<0.000000e+00> : vector<8x32xf32>
    %23 = tpu.matmul %21, %22, %cst_17 {dimension_numbers = #tpu.dot_dimension_numbers<[1], [0], [0], [1], [0, 0, 1, 1], [], []>} : vector<8x36xbf16>, vector<36x32xbf16>, vector<8x32xf32> -> vector<8x32xf32>
    %c32 = arith.constant 32 : index
    %c0_18 = arith.constant 0 : index
    %24 = vector.load %arg6[%c32, %c0_18] : memref<64x36xbf16, #tpu.memory_space<vmem>>, vector<32x36xbf16>
    %c0_19 = arith.constant 0 : index
    %c0_20 = arith.constant 0 : index
    %c0_21 = arith.constant 0 : index
    %25 = vector.load %arg4[%c0_19, %c0_20, %c0_21] : memref<1x36x8xbf16, #tpu.memory_space<vmem>>, vector<1x36x8xbf16>
    %26 = vector.shape_cast %25 : vector<1x36x8xbf16> to vector<36x8xbf16>
    %cst_22 = arith.constant dense<0.000000e+00> : vector<32x8xf32>
    %27 = tpu.matmul %24, %26, %cst_22 {dimension_numbers = #tpu.dot_dimension_numbers<[1], [0], [0], [1], [0, 0, 1, 1], [], []>} : vector<32x36xbf16>, vector<36x8xbf16>, vector<32x8xf32> -> vector<32x8xf32>
    %28 = arith.truncf %23 : vector<8x32xf32> to vector<8x32xbf16>
    %29 = arith.truncf %19 : vector<32x384xf32> to vector<32x384xbf16>
    %cst_23 = arith.constant dense<0.000000e+00> : vector<8x384xf32>
    %30 = tpu.matmul %28, %29, %cst_23 {dimension_numbers = #tpu.dot_dimension_numbers<[1], [0], [0], [1], [0, 0, 1, 1], [], []>} : vector<8x32xbf16>, vector<32x384xbf16>, vector<8x384xf32> -> vector<8x384xf32>
    %cst_24 = arith.constant dense<0xFF800000> : vector<384xf32>
    %31 = vector.multi_reduction <maximumf>, %30, %cst_24 [0] : vector<8x384xf32> to vector<384xf32>
    %32 = vector.shape_cast %31 : vector<384xf32> to vector<1x384xf32>
    %33 = vector.broadcast %32 : vector<1x384xf32> to vector<8x384xf32>
    %34 = arith.subf %30, %33 : vector<8x384xf32>
    %35 = math.exp %34 : vector<8x384xf32>
    %cst_25 = arith.constant dense<0.000000e+00> : vector<384xf32>
    %36 = vector.multi_reduction <add>, %35, %cst_25 [0] : vector<8x384xf32> to vector<384xf32>
    %37 = vector.shape_cast %36 : vector<384xf32> to vector<1x384xf32>
    %38 = tpu.reciprocal %37 {approx = true} : vector<1x384xf32> -> vector<1x384xf32>
    %39 = arith.mulf %37, %38 : vector<1x384xf32>
    %cst_26 = arith.constant 2.000000e+00 : f32
    %40 = vector.broadcast %cst_26 : f32 to vector<1x384xf32>
    %41 = arith.subf %40, %39 : vector<1x384xf32>
    %42 = arith.mulf %38, %41 : vector<1x384xf32>
    %43 = vector.broadcast %42 : vector<1x384xf32> to vector<8x384xf32>
    %44 = arith.mulf %35, %43 : vector<8x384xf32>
    %45 = arith.truncf %44 : vector<8x384xf32> to vector<8x384xbf16>
    %46 = arith.truncf %27 : vector<32x8xf32> to vector<32x8xbf16>
    %cst_27 = arith.constant dense<0.000000e+00> : vector<32x384xf32>
    %47 = tpu.matmul %46, %45, %cst_27 {dimension_numbers = #tpu.dot_dimension_numbers<[1], [0], [0], [1], [0, 0, 1, 1], [], []>} : vector<32x8xbf16>, vector<8x384xbf16>, vector<32x384xf32> -> vector<32x384xf32>
    %c32_28 = arith.constant 32 : index
    %c0_29 = arith.constant 0 : index
    %48 = vector.load %arg7[%c32_28, %c0_29] : memref<100x32xbf16, #tpu.memory_space<vmem>>, vector<32x32xbf16>
    %49 = arith.truncf %47 : vector<32x384xf32> to vector<32x384xbf16>
    %cst_30 = arith.constant dense<0.000000e+00> : vector<32x384xf32>
    %50 = tpu.matmul %48, %49, %cst_30 {dimension_numbers = #tpu.dot_dimension_numbers<[1], [0], [0], [1], [0, 0, 1, 1], [], []>} : vector<32x32xbf16>, vector<32x384xbf16>, vector<32x384xf32> -> vector<32x384xf32>
    %51 = arith.addf %13, %50 : vector<32x384xf32>
    %c0_31 = arith.constant 0 : index
    %c1 = arith.constant 1 : index
    %52 = vector.load %arg9[%c0_31, %c1] : memref<32x2xf32, #tpu.memory_space<vmem>>, vector<32x1xf32>
    %53 = vector.broadcast %52 : vector<32x1xf32> to vector<32x384xf32>
    %54 = arith.addf %51, %53 : vector<32x384xf32>
    %c0_32 = arith.constant 0 : index
    %c0_33 = arith.constant 0 : index
    %55 = vector.load %arg5[%c0_32, %c0_33] : memref<1x384xf32, #tpu.memory_space<vmem>>, vector<1x384xf32>
    %56 = vector.broadcast %55 : vector<1x384xf32> to vector<32x384xf32>
    %57 = arith.mulf %54, %56 : vector<32x384xf32>
    %58 = arith.truncf %57 : vector<32x384xf32> to vector<32x384xbf16>
    %cst_34 = arith.constant 0.000000e+00 : bf16
    %59 = vector.broadcast %cst_34 : bf16 to vector<288x24xbf16>
    %c0_35 = arith.constant 0 : index
    %c0_36 = arith.constant 0 : index
    %60 = vector.load %arg11[%c0_35, %c0_36] : memref<288x384xbf16, #tpu.memory_space<vmem>>, vector<288x24xbf16>
    tpu.vector_store %arg11[%c0_35, %c0_36], %59 {strides = array<i32>} : memref<288x384xbf16, #tpu.memory_space<vmem>>, vector<288x24xbf16>,
    %cst_37 = arith.constant 0.000000e+00 : bf16
    %61 = vector.broadcast %cst_37 : bf16 to vector<288x24xbf16>
    %c0_38 = arith.constant 0 : index
    %c360 = arith.constant 360 : index
    %62 = vector.load %arg11[%c0_38, %c360] : memref<288x384xbf16, #tpu.memory_space<vmem>>, vector<288x24xbf16>
    tpu.vector_store %arg11[%c0_38, %c360], %61 {strides = array<i32>} : memref<288x384xbf16, #tpu.memory_space<vmem>>, vector<288x24xbf16>,
    %63 = vector.extract_strided_slice %58 {offsets = [0, 0], sizes = [32, 365], strides = [1, 1]} : vector<32x384xbf16> to vector<32x365xbf16>
    %c0_39 = arith.constant 0 : index
    %c19 = arith.constant 19 : index
    %64 = vector.load %arg11[%c0_39, %c19] : memref<288x384xbf16, #tpu.memory_space<vmem>>, vector<32x365xbf16>
    tpu.vector_store %arg11[%c0_39, %c19], %63 {strides = array<i32>} : memref<288x384xbf16, #tpu.memory_space<vmem>>, vector<32x365xbf16>,
    %65 = vector.extract_strided_slice %58 {offsets = [0, 0], sizes = [32, 366], strides = [1, 1]} : vector<32x384xbf16> to vector<32x366xbf16>
    %c32_40 = arith.constant 32 : index
    %c18 = arith.constant 18 : index
    %66 = vector.load %arg11[%c32_40, %c18] : memref<288x384xbf16, #tpu.memory_space<vmem>>, vector<32x366xbf16>
    tpu.vector_store %arg11[%c32_40, %c18], %65 {strides = array<i32>} : memref<288x384xbf16, #tpu.memory_space<vmem>>, vector<32x366xbf16>,
    %67 = vector.extract_strided_slice %58 {offsets = [0, 0], sizes = [32, 367], strides = [1, 1]} : vector<32x384xbf16> to vector<32x367xbf16>
    %c64_41 = arith.constant 64 : index
    %c17 = arith.constant 17 : index
    %68 = vector.load %arg11[%c64_41, %c17] : memref<288x384xbf16, #tpu.memory_space<vmem>>, vector<32x367xbf16>
    tpu.vector_store %arg11[%c64_41, %c17], %67 {strides = array<i32>} : memref<288x384xbf16, #tpu.memory_space<vmem>>, vector<32x367xbf16>,
    %69 = vector.extract_strided_slice %58 {offsets = [0, 0], sizes = [32, 383], strides = [1, 1]} : vector<32x384xbf16> to vector<32x383xbf16>
    %c96 = arith.constant 96 : index
    %c1_42 = arith.constant 1 : index
    %70 = vector.load %arg11[%c96, %c1_42] : memref<288x384xbf16, #tpu.memory_space<vmem>>, vector<32x383xbf16>
    tpu.vector_store %arg11[%c96, %c1_42], %69 {strides = array<i32>} : memref<288x384xbf16, #tpu.memory_space<vmem>>, vector<32x383xbf16>,
    %c128 = arith.constant 128 : index
    %c0_43 = arith.constant 0 : index
    %71 = vector.load %arg11[%c128, %c0_43] : memref<288x384xbf16, #tpu.memory_space<vmem>>, vector<32x384xbf16>
    tpu.vector_store %arg11[%c128, %c0_43], %58 {strides = array<i32>} : memref<288x384xbf16, #tpu.memory_space<vmem>>, vector<32x384xbf16>,
    %72 = vector.extract_strided_slice %58 {offsets = [0, 1], sizes = [32, 383], strides = [1, 1]} : vector<32x384xbf16> to vector<32x383xbf16>
    %c160 = arith.constant 160 : index
    %c0_44 = arith.constant 0 : index
    %73 = vector.load %arg11[%c160, %c0_44] : memref<288x384xbf16, #tpu.memory_space<vmem>>, vector<32x383xbf16>
    tpu.vector_store %arg11[%c160, %c0_44], %72 {strides = array<i32>} : memref<288x384xbf16, #tpu.memory_space<vmem>>, vector<32x383xbf16>,
    %74 = vector.extract_strided_slice %58 {offsets = [0, 17], sizes = [32, 367], strides = [1, 1]} : vector<32x384xbf16> to vector<32x367xbf16>
    %c192 = arith.constant 192 : index
    %c0_45 = arith.constant 0 : index
    %75 = vector.load %arg11[%c192, %c0_45] : memref<288x384xbf16, #tpu.memory_space<vmem>>, vector<32x367xbf16>
    tpu.vector_store %arg11[%c192, %c0_45], %74 {strides = array<i32>} : memref<288x384xbf16, #tpu.memory_space<vmem>>, vector<32x367xbf16>,
    %76 = vector.extract_strided_slice %58 {offsets = [0, 18], sizes = [32, 366], strides = [1, 1]} : vector<32x384xbf16> to vector<32x366xbf16>
    %c224 = arith.constant 224 : index
    %c0_46 = arith.constant 0 : index
    %77 = vector.load %arg11[%c224, %c0_46] : memref<288x384xbf16, #tpu.memory_space<vmem>>, vector<32x366xbf16>
    tpu.vector_store %arg11[%c224, %c0_46], %76 {strides = array<i32>} : memref<288x384xbf16, #tpu.memory_space<vmem>>, vector<32x366xbf16>,
    %78 = vector.extract_strided_slice %58 {offsets = [0, 19], sizes = [32, 365], strides = [1, 1]} : vector<32x384xbf16> to vector<32x365xbf16>
    %c256 = arith.constant 256 : index
    %c0_47 = arith.constant 0 : index
    %79 = vector.load %arg11[%c256, %c0_47] : memref<288x384xbf16, #tpu.memory_space<vmem>>, vector<32x365xbf16>
    tpu.vector_store %arg11[%c256, %c0_47], %78 {strides = array<i32>} : memref<288x384xbf16, #tpu.memory_space<vmem>>, vector<32x365xbf16>,
    %c0_48 = arith.constant 0 : index
    %c0_49 = arith.constant 0 : index
    %80 = vector.load %arg8[%c0_48, %c0_49] : memref<4x288xbf16, #tpu.memory_space<vmem>>, vector<4x288xbf16>
    %c0_50 = arith.constant 0 : index
    %c0_51 = arith.constant 0 : index
    %81 = vector.load %arg11[%c0_50, %c0_51] : memref<288x384xbf16, #tpu.memory_space<vmem>>, vector<288x384xbf16>
    %cst_52 = arith.constant dense<0.000000e+00> : vector<4x384xf32>
    %82 = tpu.matmul %80, %81, %cst_52 {dimension_numbers = #tpu.dot_dimension_numbers<[1], [0], [0], [1], [0, 0, 1, 1], [], []>} : vector<4x288xbf16>, vector<288x384xbf16>, vector<4x384xf32> -> vector<4x384xf32>
    %c0_53 = arith.constant 0 : index
    %c0_54 = arith.constant 0 : index
    %c0_55 = arith.constant 0 : index
    %83 = vector.load %arg10[%c0_53, %c0_54, %c0_55] : memref<1x4x384xf32, #tpu.memory_space<vmem>>, vector<1x4x384xf32>
    %84 = vector.shape_cast %83 : vector<1x4x384xf32> to vector<4x384xf32>
    %85 = vector.shape_cast %82 : vector<4x384xf32> to vector<1x4x384xf32>
    tpu.vector_store %arg10[%c0_53, %c0_54, %c0_55], %85 {strides = array<i32>} : memref<1x4x384xf32, #tpu.memory_space<vmem>>, vector<1x4x384xf32>,
    return
  }
  func.func @transform_0(%arg0: i32) -> (i32, i32, i32) {
    %c0_i32 = arith.constant 0 : i32
    %c0_i32_0 = arith.constant 0 : i32
    %c0_i32_1 = arith.constant 0 : i32
    return %arg0, %c0_i32, %c0_i32_0 : i32, i32, i32
  }
  func.func @transform_1(%arg0: i32) -> (i32, i32, i32) {
    %c0_i32 = arith.constant 0 : i32
    %c0_i32_0 = arith.constant 0 : i32
    %c0_i32_1 = arith.constant 0 : i32
    return %arg0, %c0_i32, %c0_i32_0 : i32, i32, i32
  }
  func.func @transform_2(%arg0: i32) -> (i32, i32, i32) {
    %c0_i32 = arith.constant 0 : i32
    %c0_i32_0 = arith.constant 0 : i32
    %c0_i32_1 = arith.constant 0 : i32
    return %arg0, %c0_i32, %c0_i32_0 : i32, i32, i32
  }
  func.func @transform_3(%arg0: i32) -> (i32, i32, i32) {
    %c0_i32 = arith.constant 0 : i32
    %c0_i32_0 = arith.constant 0 : i32
    %c0_i32_1 = arith.constant 0 : i32
    return %arg0, %c0_i32, %c0_i32_0 : i32, i32, i32
  }
  func.func @transform_4(%arg0: i32) -> (i32, i32) {
    %c0_i32 = arith.constant 0 : i32
    %c0_i32_0 = arith.constant 0 : i32
    %c0_i32_1 = arith.constant 0 : i32
    return %c0_i32, %c0_i32_0 : i32, i32
  }
  func.func @transform_5(%arg0: i32) -> (i32, i32) {
    %c0_i32 = arith.constant 0 : i32
    %c0_i32_0 = arith.constant 0 : i32
    %c0_i32_1 = arith.constant 0 : i32
    return %c0_i32, %c0_i32_0 : i32, i32
  }
  func.func @transform_6(%arg0: i32) -> (i32, i32) {
    %c0_i32 = arith.constant 0 : i32
    %c0_i32_0 = arith.constant 0 : i32
    %c0_i32_1 = arith.constant 0 : i32
    return %c0_i32, %c0_i32_0 : i32, i32
  }
  func.func @transform_7(%arg0: i32) -> (i32, i32) {
    %c0_i32 = arith.constant 0 : i32
    %c0_i32_0 = arith.constant 0 : i32
    %c0_i32_1 = arith.constant 0 : i32
    return %c0_i32, %c0_i32_0 : i32, i32
  }
  func.func @transform_8(%arg0: i32) -> (i32, i32) {
    %c0_i32 = arith.constant 0 : i32
    %c0_i32_0 = arith.constant 0 : i32
    %c0_i32_1 = arith.constant 0 : i32
    return %c0_i32, %c0_i32_0 : i32, i32
  }
  func.func @transform_9(%arg0: i32) -> (i32, i32, i32) {
    %c0_i32 = arith.constant 0 : i32
    %c0_i32_0 = arith.constant 0 : i32
    %c0_i32_1 = arith.constant 0 : i32
    return %arg0, %c0_i32, %c0_i32_0 : i32, i32, i32
  }
}

</mosaic_0001>

<llo_original>
// kernel: unet_forward.1
$region0: #{unet_forward.1}
  #allocation0 [shape = 'u32[]', space=smem, size = 0x4, offset = 0x4, fixed_abs, tag = 'smem constant byte address 0x4 - core index']
  #allocation1 [shape = 'u32[72,128]{1,0:T(1,128)}', space=vmem, size = 0x9000, scoped, tag = 'internal scratch']
  #allocation2 [shape = 'bf16[288,384]{1,0:T(8,128)(2,1)}', space=vmem, size = 0x36000, scoped, tag = 'scratch operand']
  %s0 = inlined_call_operand.vmem [shape: bf16[2,36,384], index: 0, kind: input, shape index: {}]
  %s1 = inlined_call_operand.vmem [shape: f32[2,32,1], index: 1, kind: input, shape index: {}]
  %s2 = inlined_call_operand.vmem [shape: bf16[2,8,36], index: 2, kind: input, shape index: {}]
  %s3 = inlined_call_operand.vmem [shape: bf16[2,36,8], index: 3, kind: input, shape index: {}]
  %s4 = inlined_call_operand.vmem [shape: f32[1,384], index: 4, kind: input, shape index: {}]
  %s5 = inlined_call_operand.vmem [shape: bf16[64,36], index: 5, kind: input, shape index: {}]
  %s6 = inlined_call_operand.vmem [shape: bf16[100,32], index: 6, kind: input, shape index: {}]
  %s7 = inlined_call_operand.vmem [shape: bf16[4,288], index: 7, kind: input, shape index: {}]
  %s8 = inlined_call_operand.vmem [shape: f32[32,2], index: 8, kind: input, shape index: {}]
  %s9 = inlined_call_operand.vmem [shape: f32[2,4,384], index: 9, kind: output, shape index: {}]
  %s10 = sld [smem:[#allocation0]]
  $region69: #{unet_forward.1} parent=0
    _
  %s12 = ssub.s32 1, %s10
  %s13 = scalar_select 0, %s12, %s10
  loop: start=0, step=1, limit=4
  $region2: #{unet_forward.1} parent=0 // loop_pre_header
    _
  $region3: #{unet_forward.1} parent=0 // loop_header
    %s15 = sphi 0, %s19
    %p16 = scmp.ge.s32.totalorder %s15, 4
    %s25 = sphi 0, %s27
    %s28 = sphi 0, %s25
    %s29 = sphi 0, %s28
    %s45 = sphi 0, %s29
    %s51 = sphi 0, %s53
    %s54 = sphi 0, %s51
    %s55 = sphi 0, %s54
    %s71 = sphi 0, %s55
    %s77 = sphi 0, %s79
    %s80 = sphi 0, %s77
    %s81 = sphi 0, %s80
    %s97 = sphi 0, %s81
    %s103 = sphi 0, %s105
    %s106 = sphi 0, %s103
    %s107 = sphi 0, %s106
    %s123 = sphi 0, %s107
    %s127 = sphi 0, %s127
    %s129 = sphi 0, %s127
    %s130 = sphi 0, %s129
    %s144 = sphi 0, %s130
    %s148 = sphi 0, %s148
    %s150 = sphi 0, %s148
    %s151 = sphi 0, %s150
    %s165 = sphi 0, %s151
    %s169 = sphi 0, %s169
    %s171 = sphi 0, %s169
    %s172 = sphi 0, %s171
    %s186 = sphi 0, %s172
    %s190 = sphi 0, %s190
    %s192 = sphi 0, %s190
    %s193 = sphi 0, %s192
    %s207 = sphi 0, %s193
    %s211 = sphi 0, %s211
    %s213 = sphi 0, %s211
    %s214 = sphi 0, %s213
    %s228 = sphi 0, %s214
    %s234 = sphi 0, %s236
    %s237 = sphi 0, %s234
    %s238 = sphi 0, %s237
    %s254 = sphi 0, %s238
  $region4: #{unet_forward.1} parent=0 // loop_header_branch
    %18 = sbr.rel (%p16) target = $region8
  $region5: #{unet_forward.1} parent=0 // loop_body
    %s20 = ssub.s32 %s15, 1
    %s21 = ssub.s32 %s15, 2
    %s22 = sadd.s32 %s15, 1
    %s23 = ssub.s32 %s15, %s22
    %p24 = scmp.eq.s32.totalorder %s23, 0
    %s26 = sadd.s32 %s25, 1
    %s27 = scalar_select %p24, %s25, %s26
    %p30 = pneg %p24
    %p31 = scmp.eq.s32.totalorder %s15, 1
    %p32 = por %p30, %p31
    %p33 = scmp.ne.s32.totalorder %s25, %s28
    %p34 = scmp.eq.s32.totalorder %s15, 0
    %p35 = por %p33, %p34
    %p36 = scmp.ne.s32.totalorder %s25, %s28
    %p37 = scmp.eq.s32.totalorder %s20, 1
    %p38 = por %p36, %p37
    %p39 = scmp.ne.s32.totalorder %s28, %s29
    %p40 = scmp.eq.s32.totalorder %s20, 0
    %p41 = por %p39, %p40
    %p42 = scmp.ne.s32.totalorder %s28, %s29
    %p43 = scmp.eq.s32.totalorder %s21, 1
    %p44 = por %p42, %p43
    %p46 = scmp.ne.s32.totalorder %s29, %s45
    %p47 = scmp.eq.s32.totalorder %s21, 0
    %p48 = por %p46, %p47
    %s49 = ssub.s32 %s15, %s22
    %p50 = scmp.eq.s32.totalorder %s49, 0
    %s52 = sadd.s32 %s51, 1
    %s53 = scalar_select %p50, %s51, %s52
    %p56 = pneg %p50
    %p57 = scmp.eq.s32.totalorder %s15, 1
    %p58 = por %p56, %p57
    %p59 = scmp.ne.s32.totalorder %s51, %s54
    %p60 = scmp.eq.s32.totalorder %s15, 0
    %p61 = por %p59, %p60
    %p62 = scmp.ne.s32.totalorder %s51, %s54
    %p63 = scmp.eq.s32.totalorder %s20, 1
    %p64 = por %p62, %p63
    %p65 = scmp.ne.s32.totalorder %s54, %s55
    %p66 = scmp.eq.s32.totalorder %s20, 0
    %p67 = por %p65, %p66
    %p68 = scmp.ne.s32.totalorder %s54, %s55
    %p69 = scmp.eq.s32.totalorder %s21, 1
    %p70 = por %p68, %p69
    %p72 = scmp.ne.s32.totalorder %s55, %s71
    %p73 = scmp.eq.s32.totalorder %s21, 0
    %p74 = por %p72, %p73
    %s75 = ssub.s32 %s15, %s22
    %p76 = scmp.eq.s32.totalorder %s75, 0
    %s78 = sadd.s32 %s77, 1
    %s79 = scalar_select %p76, %s77, %s78
    %p82 = pneg %p76
    %p83 = scmp.eq.s32.totalorder %s15, 1
    %p84 = por %p82, %p83
    %p85 = scmp.ne.s32.totalorder %s77, %s80
    %p86 = scmp.eq.s32.totalorder %s15, 0
    %p87 = por %p85, %p86
    %p88 = scmp.ne.s32.totalorder %s77, %s80
    %p89 = scmp.eq.s32.totalorder %s20, 1
    %p90 = por %p88, %p89
    %p91 = scmp.ne.s32.totalorder %s80, %s81
    %p92 = scmp.eq.s32.totalorder %s20, 0
    %p93 = por %p91, %p92
    %p94 = scmp.ne.s32.totalorder %s80, %s81
    %p95 = scmp.eq.s32.totalorder %s21, 1
    %p96 = por %p94, %p95
    %p98 = scmp.ne.s32.totalorder %s81, %s97
    %p99 = scmp.eq.s32.totalorder %s21, 0
    %p100 = por %p98, %p99
    %s101 = ssub.s32 %s15, %s22
    %p102 = scmp.eq.s32.totalorder %s101, 0
    %s104 = sadd.s32 %s103, 1
    %s105 = scalar_select %p102, %s103, %s104
    %p108 = pneg %p102
    %p109 = scmp.eq.s32.totalorder %s15, 1
    %p110 = por %p108, %p109
    %p111 = scmp.ne.s32.totalorder %s103, %s106
    %p112 = scmp.eq.s32.totalorder %s15, 0
    %p113 = por %p111, %p112
    %p114 = scmp.ne.s32.totalorder %s103, %s106
    %p115 = scmp.eq.s32.totalorder %s20, 1
    %p116 = por %p114, %p115
    %p117 = scmp.ne.s32.totalorder %s106, %s107
    %p118 = scmp.eq.s32.totalorder %s20, 0
    %p119 = por %p117, %p118
    %p120 = scmp.ne.s32.totalorder %s106, %s107
    %p121 = scmp.eq.s32.totalorder %s21, 1
    %p122 = por %p120, %p121
    %p124 = scmp.ne.s32.totalorder %s107, %s123
    %p125 = scmp.eq.s32.totalorder %s21, 0
    %p126 = por %p124, %p125
    %s128 = sadd.s32 %s127, 1
    %p131 = scmp.eq.s32.totalorder %s15, 1
    %p132 = scmp.ne.s32.totalorder %s127, %s129
    %p133 = scmp.eq.s32.totalorder %s15, 0
    %p134 = por %p132, %p133
    %p135 = scmp.ne.s32.totalorder %s127, %s129
    %p136 = scmp.eq.s32.totalorder %s20, 1
    %p137 = por %p135, %p136
    %p138 = scmp.ne.s32.totalorder %s129, %s130
    %p139 = scmp.eq.s32.totalorder %s20, 0
    %p140 = por %p138, %p139
    %p141 = scmp.ne.s32.totalorder %s129, %s130
    %p142 = scmp.eq.s32.totalorder %s21, 1
    %p143 = por %p141, %p142
    %p145 = scmp.ne.s32.totalorder %s130, %s144
    %p146 = scmp.eq.s32.totalorder %s21, 0
    %p147 = por %p145, %p146
    %s149 = sadd.s32 %s148, 1
    %p152 = scmp.eq.s32.totalorder %s15, 1
    %p153 = scmp.ne.s32.totalorder %s148, %s150
    %p154 = scmp.eq.s32.totalorder %s15, 0
    %p155 = por %p153, %p154
    %p156 = scmp.ne.s32.totalorder %s148, %s150
    %p157 = scmp.eq.s32.totalorder %s20, 1
    %p158 = por %p156, %p157
    %p159 = scmp.ne.s32.totalorder %s150, %s151
    %p160 = scmp.eq.s32.totalorder %s20, 0
    %p161 = por %p159, %p160
    %p162 = scmp.ne.s32.totalorder %s150, %s151
    %p163 = scmp.eq.s32.totalorder %s21, 1
    %p164 = por %p162, %p163
    %p166 = scmp.ne.s32.totalorder %s151, %s165
    %p167 = scmp.eq.s32.totalorder %s21, 0
    %p168 = por %p166, %p167
    %s170 = sadd.s32 %s169, 1
    %p173 = scmp.eq.s32.totalorder %s15, 1
    %p174 = scmp.ne.s32.totalorder %s169, %s171
    %p175 = scmp.eq.s32.totalorder %s15, 0
    %p176 = por %p174, %p175
    %p177 = scmp.ne.s32.totalorder %s169, %s171
    %p178 = scmp.eq.s32.totalorder %s20, 1
    %p179 = por %p177, %p178
    %p180 = scmp.ne.s32.totalorder %s171, %s172
    %p181 = scmp.eq.s32.totalorder %s20, 0
    %p182 = por %p180, %p181
    %p183 = scmp.ne.s32.totalorder %s171, %s172
    %p184 = scmp.eq.s32.totalorder %s21, 1
    %p185 = por %p183, %p184
    %p187 = scmp.ne.s32.totalorder %s172, %s186
    %p188 = scmp.eq.s32.totalorder %s21, 0
    %p189 = por %p187, %p188
    %s191 = sadd.s32 %s190, 1
    %p194 = scmp.eq.s32.totalorder %s15, 1
    %p195 = scmp.ne.s32.totalorder %s190, %s192
    %p196 = scmp.eq.s32.totalorder %s15, 0
    %p197 = por %p195, %p196
    %p198 = scmp.ne.s32.totalorder %s190, %s192
    %p199 = scmp.eq.s32.totalorder %s20, 1
    %p200 = por %p198, %p199
    %p201 = scmp.ne.s32.totalorder %s192, %s193
    %p202 = scmp.eq.s32.totalorder %s20, 0
    %p203 = por %p201, %p202
    %p204 = scmp.ne.s32.totalorder %s192, %s193
    %p205 = scmp.eq.s32.totalorder %s21, 1
    %p206 = por %p204, %p205
    %p208 = scmp.ne.s32.totalorder %s193, %s207
    %p209 = scmp.eq.s32.totalorder %s21, 0
    %p210 = por %p208, %p209
    %s212 = sadd.s32 %s211, 1
    %p215 = scmp.eq.s32.totalorder %s15, 1
    %p216 = scmp.ne.s32.totalorder %s211, %s213
    %p217 = scmp.eq.s32.totalorder %s15, 0
    %p218 = por %p216, %p217
    %p219 = scmp.ne.s32.totalorder %s211, %s213
    %p220 = scmp.eq.s32.totalorder %s20, 1
    %p221 = por %p219, %p220
    %p222 = scmp.ne.s32.totalorder %s213, %s214
    %p223 = scmp.eq.s32.totalorder %s20, 0
    %p224 = por %p222, %p223
    %p225 = scmp.ne.s32.totalorder %s213, %s214
    %p226 = scmp.eq.s32.totalorder %s21, 1
    %p227 = por %p225, %p226
    %p229 = scmp.ne.s32.totalorder %s214, %s228
    %p230 = scmp.eq.s32.totalorder %s21, 0
    %p231 = por %p229, %p230
    %s232 = ssub.s32 %s15, %s22
    %p233 = scmp.eq.s32.totalorder %s232, 0
    %s235 = sadd.s32 %s234, 1
    %s236 = scalar_select %p233, %s234, %s235
    %p239 = pneg %p233
    %p240 = scmp.eq.s32.totalorder %s15, 1
    %p241 = por %p239, %p240
    %p242 = scmp.ne.s32.totalorder %s234, %s237
    %p243 = scmp.eq.s32.totalorder %s15, 0
    %p244 = por %p242, %p243
    %p245 = scmp.ne.s32.totalorder %s234, %s237
    %p246 = scmp.eq.s32.totalorder %s20, 1
    %p247 = por %p245, %p246
    %p248 = scmp.ne.s32.totalorder %s237, %s238
    %p249 = scmp.eq.s32.totalorder %s20, 0
    %p250 = por %p248, %p249
    %p251 = scmp.ne.s32.totalorder %s237, %s238
    %p252 = scmp.eq.s32.totalorder %s21, 1
    %p253 = por %p251, %p252
    %p255 = scmp.ne.s32.totalorder %s238, %s254
    %p256 = scmp.eq.s32.totalorder %s21, 0
    %p257 = por %p255, %p256
    %p258 = scmp.le.s32.totalorder 1, %s15
    %p259 = scmp.lt.s32.totalorder %s15, 3
    %p260 = pnand %p258, %p259
    %p261 = pneg %p260
    // Predicated region
    $region9: #{unet_forward.1} parent=5 // pred_check
      _
    $region10: #{unet_forward.1} parent=5 // pred_check_branch
      %263 = sbr.rel (%p260) target = $region12
    $region11: #{unet_forward.1} parent=5 // pred_region
      %s264 = ssub.s32 %s15, 1
      // Predicated region
      $region13: #{unet_forward.1} parent=11 // pred_check
        %p265 = pneg %p140
      $region14: #{unet_forward.1} parent=11 // pred_check_branch
        %267 = sbr.rel (%p265) target = $region16
      $region15: #{unet_forward.1} parent=11 // pred_region
        _
      $region16: #{unet_forward.1} parent=11 // pred_fallthru
        _
      // Predicated region
      $region17: #{unet_forward.1} parent=11 // pred_check
        %p268 = pneg %p161
      $region18: #{unet_forward.1} parent=11 // pred_check_branch
        %270 = sbr.rel (%p268) target = $region20
      $region19: #{unet_forward.1} parent=11 // pred_region
        _
      $region20: #{unet_forward.1} parent=11 // pred_fallthru
        _
      // Predicated region
      $region21: #{unet_forward.1} parent=11 // pred_check
        %p271 = pneg %p182
      $region22: #{unet_forward.1} parent=11 // pred_check_branch
        %273 = sbr.rel (%p271) target = $region24
      $region23: #{unet_forward.1} parent=11 // pred_region
        _
      $region24: #{unet_forward.1} parent=11 // pred_fallthru
        _
      // Predicated region
      $region25: #{unet_forward.1} parent=11 // pred_check
        %p274 = pneg %p203
      $region26: #{unet_forward.1} parent=11 // pred_check_branch
        %276 = sbr.rel (%p274) target = $region28
      $region27: #{unet_forward.1} parent=11 // pred_region
        _
      $region28: #{unet_forward.1} parent=11 // pred_fallthru
        _
      // Predicated region
      $region29: #{unet_forward.1} parent=11 // pred_check
        %p277 = pneg %p224
      $region30: #{unet_forward.1} parent=11 // pred_check_branch
        %279 = sbr.rel (%p277) target = $region32
      $region31: #{unet_forward.1} parent=11 // pred_region
        _
      $region32: #{unet_forward.1} parent=11 // pred_fallthru
        _
    $region12: #{unet_forward.1} parent=5 // pred_fallthru
      _
    %p280 = scmp.lt.s32.totalorder %s15, 2
    // Predicated region
    $region33: #{unet_forward.1} parent=5 // pred_check
      %p281 = pneg %p280
    $region34: #{unet_forward.1} parent=5 // pred_check_branch
      %283 = sbr.rel (%p281) target = $region36
    $region35: #{unet_forward.1} parent=5 // pred_region
      // Predicated region
      $region37: #{unet_forward.1} parent=35 // pred_check
        %p284 = pneg %p35
      $region38: #{unet_forward.1} parent=35 // pred_check_branch
        %286 = sbr.rel (%p284) target = $region40
      $region39: #{unet_forward.1} parent=35 // pred_region
        %p287 = scmp.lt.s32.totalorder %s15, 1
        %s288 = scalar_select %p287, %s15, 1
        %s289 = smul.addr %s288, 15
        %s290 = smul.addr %s289, 4
        %s291 = scalar_lea.vmem %s0, %s290
      $region40: #{unet_forward.1} parent=35 // pred_fallthru
        _
      // Predicated region
      $region41: #{unet_forward.1} parent=35 // pred_check
        %p292 = pneg %p61
      $region42: #{unet_forward.1} parent=35 // pred_check_branch
        %294 = sbr.rel (%p292) target = $region44
      $region43: #{unet_forward.1} parent=35 // pred_region
        %p295 = scmp.lt.s32.totalorder %s15, 1
        %s296 = scalar_select %p295, %s15, 1
        %s297 = smul.addr %s296, 4
        %s298 = smul.addr %s297, 8
        %s299 = scalar_lea.vmem %s1, %s298
      $region44: #{unet_forward.1} parent=35 // pred_fallthru
        _
      // Predicated region
      $region45: #{unet_forward.1} parent=35 // pred_check
        %p300 = pneg %p87
      $region46: #{unet_forward.1} parent=35 // pred_check_branch
        %302 = sbr.rel (%p300) target = $region48
      $region47: #{unet_forward.1} parent=35 // pred_region
        %p303 = scmp.lt.s32.totalorder %s15, 1
        %s304 = scalar_select %p303, %s15, 1
        %s305 = smul.addr %s304, 4
        %s306 = scalar_lea.vmem %s2, %s305
      $region48: #{unet_forward.1} parent=35 // pred_fallthru
        _
      // Predicated region
      $region49: #{unet_forward.1} parent=35 // pred_check
        %p307 = pneg %p113
      $region50: #{unet_forward.1} parent=35 // pred_check_branch
        %309 = sbr.rel (%p307) target = $region52
      $region51: #{unet_forward.1} parent=35 // pred_region
        %p310 = scmp.lt.s32.totalorder %s15, 1
        %s311 = scalar_select %p310, %s15, 1
        %s312 = smul.addr %s311, 5
        %s313 = smul.addr %s312, 4
        %s314 = scalar_lea.vmem %s3, %s313
      $region52: #{unet_forward.1} parent=35 // pred_fallthru
        _
    $region36: #{unet_forward.1} parent=5 // pred_fallthru
      _
    %p315 = scmp.le.s32.totalorder 1, %s15
    %p316 = scmp.lt.s32.totalorder %s15, 3
    %p317 = pnand %p315, %p316
    %p318 = pneg %p317
    // Predicated region
    $region53: #{unet_forward.1} parent=5 // pred_check
      _
    $region54: #{unet_forward.1} parent=5 // pred_check_branch
      %320 = sbr.rel (%p317) target = $region56
    $region55: #{unet_forward.1} parent=5 // pred_region
      %s321 = ssub.s32 %s15, 1
      %p322 = scmp.lt.s32.totalorder %s20, 1
      %s323 = scalar_select %p322, %s20, 1
      %s324 = smul.addr %s323, 15
      %s325 = smul.addr %s324, 4
      %s326 = scalar_lea.vmem %s0, %s325
      %p327 = pneg %p41
      %p328 = pneg %p38
      %p329 = scmp.lt.s32.totalorder %s20, 1
      %s330 = scalar_select %p329, %s20, 1
      %s331 = smul.addr %s330, 4
      %s332 = smul.addr %s331, 8
      %s333 = scalar_lea.vmem %s1, %s332
      %p334 = pneg %p67
      %p335 = pneg %p64
      %p336 = scmp.lt.s32.totalorder %s20, 1
      %s337 = scalar_select %p336, %s20, 1
      %s338 = smul.addr %s337, 4
      %s339 = scalar_lea.vmem %s2, %s338
      %p340 = pneg %p93
      %p341 = pneg %p90
      %p342 = scmp.lt.s32.totalorder %s20, 1
      %s343 = scalar_select %p342, %s20, 1
      %s344 = smul.addr %s343, 5
      %s345 = smul.addr %s344, 4
      %s346 = scalar_lea.vmem %s3, %s345
      %p347 = pneg %p119
      %p348 = pneg %p116
      %p349 = pneg %p140
      %p350 = pneg %p137
      %p351 = pneg %p161
      %p352 = pneg %p158
      %p353 = pneg %p182
      %p354 = pneg %p179
      %p355 = pneg %p203
      %p356 = pneg %p200
      %p357 = pneg %p224
      %p358 = pneg %p221
      %p359 = pneg %p250
      %p360 = pneg %p247
      %p361 = scmp.lt.s32.totalorder %s20, 1
      %s362 = scalar_select %p361, %s20, 1
      %s363 = smul.addr %s362, 3
      %s364 = smul.addr %s363, 4
      %s365 = scalar_lea.vmem %s9, %s364
      %p366 = scmp.lt.s32.totalorder %s20, 1
      %s367 = scalar_select %p366, %s20, 1
      %s368 = smul.addr %s367, 15
      %s369 = smul.addr %s368, 4
      %s370 = scalar_lea.vmem %s0, %s369
      %p371 = scmp.lt.s32.totalorder %s20, 1
      %s372 = scalar_select %p371, %s20, 1
      %s373 = smul.addr %s372, 4
      %s374 = smul.addr %s373, 8
      %s375 = scalar_lea.vmem %s1, %s374
      %p376 = scmp.lt.s32.totalorder %s20, 1
      %s377 = scalar_select %p376, %s20, 1
      %s378 = smul.addr %s377, 4
      %s379 = scalar_lea.vmem %s2, %s378
      %p380 = scmp.lt.s32.totalorder %s20, 1
      %s381 = scalar_select %p380, %s20, 1
      %s382 = smul.addr %s381, 5
      %s383 = smul.addr %s382, 4
      %s384 = scalar_lea.vmem %s3, %s383
      %p385 = scmp.lt.s32.totalorder %s20, 1
      %s386 = scalar_select %p385, %s20, 1
      %s387 = smul.addr %s386, 3
      %s388 = smul.addr %s387, 4
      %s389 = scalar_lea.vmem %s9, %s388
      %v391 = vld [vmem:[%s5] sm:$0xf]
      %v392 = vld [vmem:[%s5 + $0x4] sm:$0xf]
      %v393 = vld [vmem:[%s5 + $0x8] sm:$0xf]
      %v394 = vld [vmem:[%s5 + $0xc] sm:$0xf]
      %v395 = vld [vmem:[%s370] sm:$0xff]
      %v396 = vld [vmem:[%s370 + $0x8] sm:$0xf]
      %v397 = vld [vmem:[%s370 + $0xc] sm:$0xff]
      %v398 = vld [vmem:[%s370 + $0x14] sm:$0xf]
      %v399 = vld [vmem:[%s370 + $0x18] sm:$0xff]
      %v400 = vld [vmem:[%s370 + $0x20] sm:$0xf]
      %v401 = vld [vmem:[%s370 + $0x24] sm:$0xff]
      %v402 = vld [vmem:[%s370 + $0x2c] sm:$0xf]
      %v403 = vld [vmem:[%s370 + $0x30] sm:$0x33]
      %v404 = vld [vmem:[%s370 + $0x38] sm:$0x3]
      %v405 = vld [vmem:[%s375] sm:$0xff]
      %v406 = vld [vmem:[%s375 + $0x8] sm:$0xff]
      %v407 = vld [vmem:[%s375 + $0x10] sm:$0xff]
      %v408 = vld [vmem:[%s375 + $0x18] sm:$0xff]
      %410 = vset.pattern.permute.xlu0 0
      %411 = vperm.xlu0 %410, %v405
      %v412 = vpop.permute.xlu0 %411
      %415 = vset.pattern.permute.xlu0 0
      %416 = vperm.xlu0 %415, %v406
      %v417 = vpop.permute.xlu0 %416
      %420 = vset.pattern.permute.xlu0 0
      %421 = vperm.xlu0 %420, %v407
      %v422 = vpop.permute.xlu0 %421
      %425 = vset.pattern.permute.xlu0 0
      %426 = vperm.xlu0 %425, %v408
      %v427 = vpop.permute.xlu0 %426
      %v433 = vunpack.c.l.b16 %v391
      %v434 = vunpack.c.l.b16 %v392
      %v435 = vunpack.c.l.b16 %v393
      %v436 = vunpack.c.l.b16 %v394
      %v437 = vpack.c.b16 %v434, %v433
      %v438 = vpack.c.b16 %v436, %v435
      %v449 = vunpack.c.l.b16 %v395
      %v450 = vunpack.c.h.b16 %v395
      %v451 = vunpack.c.l.b16 %v396
      %v452 = vunpack.c.l.b16 %v397
      %v453 = vunpack.c.h.b16 %v397
      %v454 = vunpack.c.l.b16 %v398
      %v455 = vunpack.c.l.b16 %v399
      %v456 = vunpack.c.h.b16 %v399
      %v457 = vunpack.c.l.b16 %v400
      %v458 = vunpack.c.l.b16 %v401
      %v459 = vunpack.c.h.b16 %v401
      %v460 = vunpack.c.l.b16 %v402
      %v461 = vunpack.c.l.b16 %v403
      %v462 = vunpack.c.h.b16 %v403
      %v463 = vunpack.c.l.b16 %v404
      %v464 = vpack.c.b16 %v452, %v449
      %v465 = vpack.c.b16 %v453, %v450
      %v466 = vpack.c.b16 %v454, %v451
      %v467 = vpack.c.b16 %v458, %v455
      %v468 = vpack.c.b16 %v459, %v456
      %v469 = vpack.c.b16 %v460, %v457
      %v470 = vpack.c.b16 %v461, %v461
      %v471 = vpack.c.b16 %v462, %v462
      %v472 = vpack.c.b16 %v463, %v463
      %vm479 = vcmask 293888
      %v481 = vsel %vm479, %v437, 0
      %v484 = vsel %vm479, %v438, 0
      %vm486 = vcmask 1041408
      %v488 = vsel %vm486, %v470, 0
      %v491 = vsel %vm486, %v471, 0
      %v494 = vsel %vm486, %v472, 0
      %496 = vmatpush.bf16.msra.mxu0 0
      %497 = vmatpush.bf16.msra.mxu0 0
      %498 = vmatpush.bf16.msra.mxu0 0
      %499 = vmatpush.bf16.msra.mxu0 0
      %500 = vmatpush.bf16.msra.mxu0 0
      %501 = vmatpush.bf16.msra.mxu0 %v488
      %502 = vmatpush.bf16.msra.mxu0 %v467
      %503 = vmatpush.bf16.msra.mxu0 %v464
      %504 = vmatmul.bf16.gmra.mxu0 %v481
      %v505 = vpop.f32.mrf.mxu0
      %v506 = vadd.f32 %v412, %v505
      %v507 = vpop.f32.mrf.mxu0
      %v508 = vadd.f32 %v417, %v507
      %509 = vmatmul.bf16.gmra.mxu0 %v484
      %v510 = vpop.f32.mrf.mxu0
      %v511 = vadd.f32 %v422, %v510
      %v512 = vpop.f32.mrf.mxu0
      %v513 = vadd.f32 %v427, %v512
      %514 = vdwg.mxu0
      %515 = vmatpush.bf16.msra.mxu0 0
      %516 = vmatpush.bf16.msra.mxu0 0
      %517 = vmatpush.bf16.msra.mxu0 0
      %518 = vmatpush.bf16.msra.mxu0 0
      %519 = vmatpush.bf16.msra.mxu0 0
      %520 = vmatpush.bf16.msra.mxu0 %v491
      %521 = vmatpush.bf16.msra.mxu0 %v468
      %522 = vmatpush.bf16.msra.mxu0 %v465
      %523 = vmatmul.bf16.gmra.mxu0 %v481
      %v524 = vpop.f32.mrf.mxu0
      %v525 = vadd.f32 %v412, %v524
      %v526 = vpop.f32.mrf.mxu0
      %v527 = vadd.f32 %v417, %v526
      %528 = vmatmul.bf16.gmra.mxu0 %v484
      %v529 = vpop.f32.mrf.mxu0
      %v530 = vadd.f32 %v422, %v529
      %v531 = vpop.f32.mrf.mxu0
      %v532 = vadd.f32 %v427, %v531
      %533 = vdwg.mxu0
      %534 = vmatpush.bf16.msra.mxu0 0
      %535 = vmatpush.bf16.msra.mxu0 0
      %536 = vmatpush.bf16.msra.mxu0 0
      %537 = vmatpush.bf16.msra.mxu0 0
      %538 = vmatpush.bf16.msra.mxu0 0
      %539 = vmatpush.bf16.msra.mxu0 %v494
      %540 = vmatpush.bf16.msra.mxu0 %v469
      %541 = vmatpush.bf16.msra.mxu0 %v466
      %542 = vmatmul.bf16.gmra.mxu0 %v481
      %v543 = vpop.f32.mrf.mxu0
      %v544 = vadd.f32 %v412, %v543
      %v545 = vpop.f32.mrf.mxu0
      %v546 = vadd.f32 %v417, %v545
      %547 = vmatmul.bf16.gmra.mxu0 %v484
      %v548 = vpop.f32.mrf.mxu0
      %v549 = vadd.f32 %v422, %v548
      %v550 = vpop.f32.mrf.mxu0
      %v551 = vadd.f32 %v427, %v550
      %552 = vdwg.mxu0
      %v553 = vxor.u32 %v506, 2147483648
      %v554 = vxor.u32 %v525, 2147483648
      %v555 = vxor.u32 %v544, 2147483648
      %v556 = vxor.u32 %v508, 2147483648
      %v557 = vxor.u32 %v527, 2147483648
      %v558 = vxor.u32 %v546, 2147483648
      %v559 = vxor.u32 %v511, 2147483648
      %v560 = vxor.u32 %v530, 2147483648
      %v561 = vxor.u32 %v549, 2147483648
      %v562 = vxor.u32 %v513, 2147483648
      %v563 = vxor.u32 %v532, 2147483648
      %v564 = vxor.u32 %v551, 2147483648
      %v565 = vmul.f32 %v553, 1.442695
      %v566 = vpow.pop %v565
      %v567 = vmul.f32 %v554, 1.442695
      %v568 = vpow.pop %v567
      %v569 = vmul.f32 %v555, 1.442695
      %v570 = vpow.pop %v569
      %v571 = vmul.f32 %v556, 1.442695
      %v572 = vpow.pop %v571
      %v573 = vmul.f32 %v557, 1.442695
      %v574 = vpow.pop %v573
      %v575 = vmul.f32 %v558, 1.442695
      %v576 = vpow.pop %v575
      %v577 = vmul.f32 %v559, 1.442695
      %v578 = vpow.pop %v577
      %v579 = vmul.f32 %v560, 1.442695
      %v580 = vpow.pop %v579
      %v581 = vmul.f32 %v561, 1.442695
      %v582 = vpow.pop %v581
      %v583 = vmul.f32 %v562, 1.442695
      %v584 = vpow.pop %v583
      %v585 = vmul.f32 %v563, 1.442695
      %v586 = vpow.pop %v585
      %v587 = vmul.f32 %v564, 1.442695
      %v588 = vpow.pop %v587
      %v589 = vadd.f32 %v566, 1.0
      %v590 = vadd.f32 %v568, 1.0
      %v591 = vadd.f32 %v570, 1.0
      %v592 = vadd.f32 %v572, 1.0
      %v593 = vadd.f32 %v574, 1.0
      %v594 = vadd.f32 %v576, 1.0
      %v595 = vadd.f32 %v578, 1.0
      %v596 = vadd.f32 %v580, 1.0
      %v597 = vadd.f32 %v582, 1.0
      %v598 = vadd.f32 %v584, 1.0
      %v599 = vadd.f32 %v586, 1.0
      %v600 = vadd.f32 %v588, 1.0
      %v601 = vrcp.pop %v589
      %v602 = vmul.f32 %v589, %v601
      %v603 = vsub.f32 1.0, %v602
      %v604 = vmul.f32 %v601, %v603
      %v605 = vadd.f32 %v601, %v604
      %vm606 = vweird.f32 %v589
      %vm607 = vweird.f32 %v601
      %vm608 = vmor %vm606, %vm607
      %v609 = vsel %vm608, %v601, %v605
      %v610 = vand.u32 2147483647, %v589
      %vm611 = vcmp.eq.f32.partialorder %v610, 8.507059e+37
      %v612 = vand.u32 %v589, 2147483648
      %v613 = vor.u32 1.1754944e-38, %v612
      %v614 = vsel %vm611, %v613, %v609
      %v615 = vmul.f32 1.0, %v614
      %v616 = vrcp.pop %v590
      %v617 = vmul.f32 %v590, %v616
      %v618 = vsub.f32 1.0, %v617
      %v619 = vmul.f32 %v616, %v618
      %v620 = vadd.f32 %v616, %v619
      %vm621 = vweird.f32 %v590
      %vm622 = vweird.f32 %v616
      %vm623 = vmor %vm621, %vm622
      %v624 = vsel %vm623, %v616, %v620
      %v625 = vand.u32 2147483647, %v590
      %vm626 = vcmp.eq.f32.partialorder %v625, 8.507059e+37
      %v627 = vand.u32 %v590, 2147483648
      %v628 = vor.u32 1.1754944e-38, %v627
      %v629 = vsel %vm626, %v628, %v624
      %v630 = vmul.f32 1.0, %v629
      %v631 = vrcp.pop %v591
      %v632 = vmul.f32 %v591, %v631
      %v633 = vsub.f32 1.0, %v632
      %v634 = vmul.f32 %v631, %v633
      %v635 = vadd.f32 %v631, %v634
      %vm636 = vweird.f32 %v591
      %vm637 = vweird.f32 %v631
      %vm638 = vmor %vm636, %vm637
      %v639 = vsel %vm638, %v631, %v635
      %v640 = vand.u32 2147483647, %v591
      %vm641 = vcmp.eq.f32.partialorder %v640, 8.507059e+37
      %v642 = vand.u32 %v591, 2147483648
      %v643 = vor.u32 1.1754944e-38, %v642
      %v644 = vsel %vm641, %v643, %v639
      %v645 = vmul.f32 1.0, %v644
      %v646 = vrcp.pop %v592
      %v647 = vmul.f32 %v592, %v646
      %v648 = vsub.f32 1.0, %v647
      %v649 = vmul.f32 %v646, %v648
      %v650 = vadd.f32 %v646, %v649
      %vm651 = vweird.f32 %v592
      %vm652 = vweird.f32 %v646
      %vm653 = vmor %vm651, %vm652
      %v654 = vsel %vm653, %v646, %v650
      %v655 = vand.u32 2147483647, %v592
      %vm656 = vcmp.eq.f32.partialorder %v655, 8.507059e+37
      %v657 = vand.u32 %v592, 2147483648
      %v658 = vor.u32 1.1754944e-38, %v657
      %v659 = vsel %vm656, %v658, %v654
      %v660 = vmul.f32 1.0, %v659
      %v661 = vrcp.pop %v593
      %v662 = vmul.f32 %v593, %v661
      %v663 = vsub.f32 1.0, %v662
      %v664 = vmul.f32 %v661, %v663
      %v665 = vadd.f32 %v661, %v664
      %vm666 = vweird.f32 %v593
      %vm667 = vweird.f32 %v661
      %vm668 = vmor %vm666, %vm667
      %v669 = vsel %vm668, %v661, %v665
      %v670 = vand.u32 2147483647, %v593
      %vm671 = vcmp.eq.f32.partialorder %v670, 8.507059e+37
      %v672 = vand.u32 %v593, 2147483648
      %v673 = vor.u32 1.1754944e-38, %v672
      %v674 = vsel %vm671, %v673, %v669
      %v675 = vmul.f32 1.0, %v674
      %v676 = vrcp.pop %v594
      %v677 = vmul.f32 %v594, %v676
      %v678 = vsub.f32 1.0, %v677
      %v679 = vmul.f32 %v676, %v678
      %v680 = vadd.f32 %v676, %v679
      %vm681 = vweird.f32 %v594
      %vm682 = vweird.f32 %v676
      %vm683 = vmor %vm681, %vm682
      %v684 = vsel %vm683, %v676, %v680
      %v685 = vand.u32 2147483647, %v594
      %vm686 = vcmp.eq.f32.partialorder %v685, 8.507059e+37
      %v687 = vand.u32 %v594, 2147483648
      %v688 = vor.u32 1.1754944e-38, %v687
      %v689 = vsel %vm686, %v688, %v684
      %v690 = vmul.f32 1.0, %v689
      %v691 = vrcp.pop %v595
      %v692 = vmul.f32 %v595, %v691
      %v693 = vsub.f32 1.0, %v692
      %v694 = vmul.f32 %v691, %v693
      %v695 = vadd.f32 %v691, %v694
      %vm696 = vweird.f32 %v595
      %vm697 = vweird.f32 %v691
      %vm698 = vmor %vm696, %vm697
      %v699 = vsel %vm698, %v691, %v695
      %v700 = vand.u32 2147483647, %v595
      %vm701 = vcmp.eq.f32.partialorder %v700, 8.507059e+37
      %v702 = vand.u32 %v595, 2147483648
      %v703 = vor.u32 1.1754944e-38, %v702
      %v704 = vsel %vm701, %v703, %v699
      %v705 = vmul.f32 1.0, %v704
      %v706 = vrcp.pop %v596
      %v707 = vmul.f32 %v596, %v706
      %v708 = vsub.f32 1.0, %v707
      %v709 = vmul.f32 %v706, %v708
      %v710 = vadd.f32 %v706, %v709
      %vm711 = vweird.f32 %v596
      %vm712 = vweird.f32 %v706
      %vm713 = vmor %vm711, %vm712
      %v714 = vsel %vm713, %v706, %v710
      %v715 = vand.u32 2147483647, %v596
      %vm716 = vcmp.eq.f32.partialorder %v715, 8.507059e+37
      %v717 = vand.u32 %v596, 2147483648
      %v718 = vor.u32 1.1754944e-38, %v717
      %v719 = vsel %vm716, %v718, %v714
      %v720 = vmul.f32 1.0, %v719
      %v721 = vrcp.pop %v597
      %v722 = vmul.f32 %v597, %v721
      %v723 = vsub.f32 1.0, %v722
      %v724 = vmul.f32 %v721, %v723
      %v725 = vadd.f32 %v721, %v724
      %vm726 = vweird.f32 %v597
      %vm727 = vweird.f32 %v721
      %vm728 = vmor %vm726, %vm727
      %v729 = vsel %vm728, %v721, %v725
      %v730 = vand.u32 2147483647, %v597
      %vm731 = vcmp.eq.f32.partialorder %v730, 8.507059e+37
      %v732 = vand.u32 %v597, 2147483648
      %v733 = vor.u32 1.1754944e-38, %v732
      %v734 = vsel %vm731, %v733, %v729
      %v735 = vmul.f32 1.0, %v734
      %v736 = vrcp.pop %v598
      %v737 = vmul.f32 %v598, %v736
      %v738 = vsub.f32 1.0, %v737
      %v739 = vmul.f32 %v736, %v738
      %v740 = vadd.f32 %v736, %v739
      %vm741 = vweird.f32 %v598
      %vm742 = vweird.f32 %v736
      %vm743 = vmor %vm741, %vm742
      %v744 = vsel %vm743, %v736, %v740
      %v745 = vand.u32 2147483647, %v598
      %vm746 = vcmp.eq.f32.partialorder %v745, 8.507059e+37
      %v747 = vand.u32 %v598, 2147483648
      %v748 = vor.u32 1.1754944e-38, %v747
      %v749 = vsel %vm746, %v748, %v744
      %v750 = vmul.f32 1.0, %v749
      %v751 = vrcp.pop %v599
      %v752 = vmul.f32 %v599, %v751
      %v753 = vsub.f32 1.0, %v752
      %v754 = vmul.f32 %v751, %v753
      %v755 = vadd.f32 %v751, %v754
      %vm756 = vweird.f32 %v599
      %vm757 = vweird.f32 %v751
      %vm758 = vmor %vm756, %vm757
      %v759 = vsel %vm758, %v751, %v755
      %v760 = vand.u32 2147483647, %v599
      %vm761 = vcmp.eq.f32.partialorder %v760, 8.507059e+37
      %v762 = vand.u32 %v599, 2147483648
      %v763 = vor.u32 1.1754944e-38, %v762
      %v764 = vsel %vm761, %v763, %v759
      %v765 = vmul.f32 1.0, %v764
      %v766 = vrcp.pop %v600
      %v767 = vmul.f32 %v600, %v766
      %v768 = vsub.f32 1.0, %v767
      %v769 = vmul.f32 %v766, %v768
      %v770 = vadd.f32 %v766, %v769
      %vm771 = vweird.f32 %v600
      %vm772 = vweird.f32 %v766
      %vm773 = vmor %vm771, %vm772
      %v774 = vsel %vm773, %v766, %v770
      %v775 = vand.u32 2147483647, %v600
      %vm776 = vcmp.eq.f32.partialorder %v775, 8.507059e+37
      %v777 = vand.u32 %v600, 2147483648
      %v778 = vor.u32 1.1754944e-38, %v777
      %v779 = vsel %vm776, %v778, %v774
      %v780 = vmul.f32 1.0, %v779
      %v781 = vmul.f32 %v506, %v615
      %v782 = vmul.f32 %v525, %v630
      %v783 = vmul.f32 %v544, %v645
      %v784 = vmul.f32 %v508, %v660
      %v785 = vmul.f32 %v527, %v675
      %v786 = vmul.f32 %v546, %v690
      %v787 = vmul.f32 %v511, %v705
      %v788 = vmul.f32 %v530, %v720
      %v789 = vmul.f32 %v549, %v735
      %v790 = vmul.f32 %v513, %v750
      %v791 = vmul.f32 %v532, %v765
      %v792 = vmul.f32 %v551, %v780
      %v793 = vpack.c.bf16 %v784, %v781
      %v794 = vpack.c.bf16 %v785, %v782
      %v795 = vpack.c.bf16 %v786, %v783
      %v796 = vpack.c.bf16 %v790, %v787
      %v797 = vpack.c.bf16 %v791, %v788
      %v798 = vpack.c.bf16 %v792, %v789
      %v799 = vld [vmem:[%s6] sm:$0xf]
      %v800 = vld [vmem:[%s6 + $0x4] sm:$0xf]
      %v801 = vld [vmem:[%s6 + $0x8] sm:$0xf]
      %v802 = vld [vmem:[%s6 + $0xc] sm:$0xf]
      %v803 = vld [vmem:[%s8] sm:$0xff]
      %v804 = vld [vmem:[%s8 + $0x8] sm:$0xff]
      %v805 = vld [vmem:[%s8 + $0x10] sm:$0xff]
      %v806 = vld [vmem:[%s8 + $0x18] sm:$0xff]
      %808 = vset.pattern.permute.xlu0 0
      %809 = vperm.xlu0 %808, %v803
      %v810 = vpop.permute.xlu0 %809
      %813 = vset.pattern.permute.xlu0 0
      %814 = vperm.xlu0 %813, %v804
      %v815 = vpop.permute.xlu0 %814
      %818 = vset.pattern.permute.xlu0 0
      %819 = vperm.xlu0 %818, %v805
      %v820 = vpop.permute.xlu0 %819
      %823 = vset.pattern.permute.xlu0 0
      %824 = vperm.xlu0 %823, %v806
      %v825 = vpop.permute.xlu0 %824
      %v831 = vunpack.c.l.b16 %v799
      %v832 = vunpack.c.l.b16 %v800
      %v833 = vunpack.c.l.b16 %v801
      %v834 = vunpack.c.l.b16 %v802
      %v835 = vpack.c.b16 %v832, %v831
      %v836 = vpack.c.b16 %v834, %v833
      %vm837 = vcmask 261120
      %v839 = vsel %vm837, %v835, 0
      %v842 = vsel %vm837, %v836, 0
      %844 = vmatpush.bf16.msra.mxu0 0
      %845 = vmatpush.bf16.msra.mxu0 0
      %846 = vmatpush.bf16.msra.mxu0 0
      %847 = vmatpush.bf16.msra.mxu0 0
      %848 = vmatpush.bf16.msra.mxu0 0
      %849 = vmatpush.bf16.msra.mxu0 0
      %850 = vmatpush.bf16.msra.mxu0 %v796
      %851 = vmatpush.bf16.msra.mxu0 %v793
      %852 = vmatmul.bf16.gmra.mxu0 %v839
      %v853 = vpop.f32.mrf.mxu0
      %v854 = vadd.f32 %v810, %v853
      %v855 = vpop.f32.mrf.mxu0
      %v856 = vadd.f32 %v815, %v855
      %857 = vmatmul.bf16.gmra.mxu0 %v842
      %v858 = vpop.f32.mrf.mxu0
      %v859 = vadd.f32 %v820, %v858
      %v860 = vpop.f32.mrf.mxu0
      %v861 = vadd.f32 %v825, %v860
      %862 = vdwg.mxu0
      %863 = vmatpush.bf16.msra.mxu0 0
      %864 = vmatpush.bf16.msra.mxu0 0
      %865 = vmatpush.bf16.msra.mxu0 0
      %866 = vmatpush.bf16.msra.mxu0 0
      %867 = vmatpush.bf16.msra.mxu0 0
      %868 = vmatpush.bf16.msra.mxu0 0
      %869 = vmatpush.bf16.msra.mxu0 %v797
      %870 = vmatpush.bf16.msra.mxu0 %v794
      %871 = vmatmul.bf16.gmra.mxu0 %v839
      %v872 = vpop.f32.mrf.mxu0
      %v873 = vadd.f32 %v810, %v872
      %v874 = vpop.f32.mrf.mxu0
      %v875 = vadd.f32 %v815, %v874
      %876 = vmatmul.bf16.gmra.mxu0 %v842
      %v877 = vpop.f32.mrf.mxu0
      %v878 = vadd.f32 %v820, %v877
      %v879 = vpop.f32.mrf.mxu0
      %v880 = vadd.f32 %v825, %v879
      %881 = vdwg.mxu0
      %882 = vmatpush.bf16.msra.mxu0 0
      %883 = vmatpush.bf16.msra.mxu0 0
      %884 = vmatpush.bf16.msra.mxu0 0
      %885 = vmatpush.bf16.msra.mxu0 0
      %886 = vmatpush.bf16.msra.mxu0 0
      %887 = vmatpush.bf16.msra.mxu0 0
      %888 = vmatpush.bf16.msra.mxu0 %v798
      %889 = vmatpush.bf16.msra.mxu0 %v795
      %890 = vmatmul.bf16.gmra.mxu0 %v839
      %v891 = vpop.f32.mrf.mxu0
      %v892 = vadd.f32 %v810, %v891
      %v893 = vpop.f32.mrf.mxu0
      %v894 = vadd.f32 %v815, %v893
      %895 = vmatmul.bf16.gmra.mxu0 %v842
      %v896 = vpop.f32.mrf.mxu0
      %v897 = vadd.f32 %v820, %v896
      %v898 = vpop.f32.mrf.mxu0
      %v899 = vadd.f32 %v825, %v898
      %900 = vdwg.mxu0
      %v901 = vld [vmem:[%s379] sm:$0xf]
      %v902 = vld [vmem:[%s6 + $0x20] sm:$0xf]
      %v903 = vld [vmem:[%s6 + $0x24] sm:$0xf]
      %v904 = vld [vmem:[%s6 + $0x28] sm:$0xf]
      %v905 = vld [vmem:[%s6 + $0x2c] sm:$0xf]
      %v906 = vld [vmem:[%s6 + $0x30] sm:$0x3]
      %v912 = vunpack.c.l.b16 %v902
      %v913 = vunpack.c.l.b16 %v903
      %v914 = vunpack.c.l.b16 %v904
      %v915 = vunpack.c.l.b16 %v905
      %v916 = vunpack.c.l.b16 %v906
      %v917 = vpack.c.b16 %v913, %v912
      %v918 = vpack.c.b16 %v915, %v914
      %v919 = vpack.c.b16 %v916, %v916
      %v923 = vsel %vm479, %v901, 0
      %v926 = vsel %vm486, %v919, 0
      %928 = vmatpush.bf16.msra.mxu0 0
      %929 = vmatpush.bf16.msra.mxu0 0
      %930 = vmatpush.bf16.msra.mxu0 0
      %931 = vmatpush.bf16.msra.mxu0 0
      %932 = vmatpush.bf16.msra.mxu0 0
      %933 = vmatpush.bf16.msra.mxu0 %v926
      %934 = vmatpush.bf16.msra.mxu0 %v918
      %935 = vmatpush.bf16.msra.mxu0 %v917
      %936 = vmatmul.bf16.gmra.mxu0 %v923
      %v937 = vpop.f32.mrf.mxu0
      %v938 = vadd.f32 0.0, %v937
      %v939 = vpop.f32.mrf.mxu0
      %940 = vdwg.mxu0
      %v941 = vld [vmem:[%s5 + $0x10] sm:$0xf]
      %v942 = vld [vmem:[%s5 + $0x14] sm:$0xf]
      %v943 = vld [vmem:[%s5 + $0x18] sm:$0xf]
      %v944 = vld [vmem:[%s5 + $0x1c] sm:$0xf]
      %v945 = vld [vmem:[%s384] sm:$0xf]
      %v946 = vld [vmem:[%s384 + $0x4] sm:$0xf]
      %v947 = vld [vmem:[%s384 + $0x8] sm:$0xf]
      %v948 = vld [vmem:[%s384 + $0xc] sm:$0xf]
      %v949 = vld [vmem:[%s384 + $0x10] sm:$0x3]
      %v954 = vunpack.c.l.b16 %v941
      %v955 = vunpack.c.l.b16 %v942
      %v956 = vunpack.c.l.b16 %v943
      %v957 = vunpack.c.l.b16 %v944
      %v958 = vpack.c.b16 %v955, %v954
      %v959 = vpack.c.b16 %v957, %v956
      %v965 = vunpack.c.l.b16 %v945
      %v966 = vunpack.c.l.b16 %v946
      %v967 = vunpack.c.l.b16 %v947
      %v968 = vunpack.c.l.b16 %v948
      %v969 = vunpack.c.l.b16 %v949
      %v970 = vpack.c.b16 %v966, %v965
      %v971 = vpack.c.b16 %v968, %v967
      %v972 = vpack.c.b16 %v969, %v969
      %v976 = vsel %vm479, %v958, 0
      %v979 = vsel %vm479, %v959, 0
      %v982 = vsel %vm486, %v972, 0
      %984 = vmatpush.bf16.msra.mxu0 0
      %985 = vmatpush.bf16.msra.mxu0 0
      %986 = vmatpush.bf16.msra.mxu0 0
      %987 = vmatpush.bf16.msra.mxu0 0
      %988 = vmatpush.bf16.msra.mxu0 0
      %989 = vmatpush.bf16.msra.mxu0 %v982
      %990 = vmatpush.bf16.msra.mxu0 %v971
      %991 = vmatpush.bf16.msra.mxu0 %v970
      %992 = vmatmul.bf16.gmra.mxu0 %v976
      %v993 = vpop.f32.mrf.mxu0
      %v994 = vadd.f32 0.0, %v993
      %v995 = vpop.f32.mrf.mxu0
      %v996 = vadd.f32 0.0, %v995
      %997 = vmatmul.bf16.gmra.mxu0 %v979
      %v998 = vpop.f32.mrf.mxu0
      %v999 = vadd.f32 0.0, %v998
      %v1000 = vpop.f32.mrf.mxu0
      %v1001 = vadd.f32 0.0, %v1000
      %1002 = vdwg.mxu0
      %v1003 = vpack.c.bf16 %v938, %v938
      %v1004 = vpack.c.bf16 %v856, %v854
      %v1005 = vpack.c.bf16 %v875, %v873
      %v1006 = vpack.c.bf16 %v894, %v892
      %v1007 = vpack.c.bf16 %v861, %v859
      %v1008 = vpack.c.bf16 %v880, %v878
      %v1009 = vpack.c.bf16 %v899, %v897
      %v1011 = vsel %vm837, %v1003, 0
      %1013 = vmatpush.bf16.msra.mxu0 0
      %1014 = vmatpush.bf16.msra.mxu0 0
      %1015 = vmatpush.bf16.msra.mxu0 0
      %1016 = vmatpush.bf16.msra.mxu0 0
      %1017 = vmatpush.bf16.msra.mxu0 0
      %1018 = vmatpush.bf16.msra.mxu0 0
      %1019 = vmatpush.bf16.msra.mxu0 %v1007
      %1020 = vmatpush.bf16.msra.mxu0 %v1004
      %1021 = vmatmul.bf16.gmra.mxu0 %v1011
      %v1022 = vpop.f32.mrf.mxu0
      %v1023 = vadd.f32 0.0, %v1022
      %v1024 = vpop.f32.mrf.mxu0
      %1025 = vdwg.mxu0
      %1026 = vmatpush.bf16.msra.mxu0 0
      %1027 = vmatpush.bf16.msra.mxu0 0
      %1028 = vmatpush.bf16.msra.mxu0 0
      %1029 = vmatpush.bf16.msra.mxu0 0
      %1030 = vmatpush.bf16.msra.mxu0 0
      %1031 = vmatpush.bf16.msra.mxu0 0
      %1032 = vmatpush.bf16.msra.mxu0 %v1008
      %1033 = vmatpush.bf16.msra.mxu0 %v1005
      %1034 = vmatmul.bf16.gmra.mxu0 %v1011
      %v1035 = vpop.f32.mrf.mxu0
      %v1036 = vadd.f32 0.0, %v1035
      %v1037 = vpop.f32.mrf.mxu0
      %1038 = vdwg.mxu0
      %1039 = vmatpush.bf16.msra.mxu0 0
      %1040 = vmatpush.bf16.msra.mxu0 0
      %1041 = vmatpush.bf16.msra.mxu0 0
      %1042 = vmatpush.bf16.msra.mxu0 0
      %1043 = vmatpush.bf16.msra.mxu0 0
      %1044 = vmatpush.bf16.msra.mxu0 0
      %1045 = vmatpush.bf16.msra.mxu0 %v1009
      %1046 = vmatpush.bf16.msra.mxu0 %v1006
      %1047 = vmatmul.bf16.gmra.mxu0 %v1011
      %v1048 = vpop.f32.mrf.mxu0
      %v1049 = vadd.f32 0.0, %v1048
      %v1050 = vpop.f32.mrf.mxu0
      %1051 = vdwg.mxu0
      %v1052 = vrot.slane %v1023, 4
      %v1053 = vmax.f32 %v1023, %v1052
      %v1054 = vrot.slane %v1053, 2
      %v1055 = vmax.f32 %v1053, %v1054
      %v1056 = vrot.slane %v1055, 1
      %v1057 = vmax.f32 %v1055, %v1056
      %v1058 = vrot.slane %v1036, 4
      %v1059 = vmax.f32 %v1036, %v1058
      %v1060 = vrot.slane %v1059, 2
      %v1061 = vmax.f32 %v1059, %v1060
      %v1062 = vrot.slane %v1061, 1
      %v1063 = vmax.f32 %v1061, %v1062
      %v1064 = vrot.slane %v1049, 4
      %v1065 = vmax.f32 %v1049, %v1064
      %v1066 = vrot.slane %v1065, 2
      %v1067 = vmax.f32 %v1065, %v1066
      %v1068 = vrot.slane %v1067, 1
      %v1069 = vmax.f32 %v1067, %v1068
      %v1070 = vsub.f32 %v1023, %v1057
      %v1071 = vsub.f32 %v1036, %v1063
      %v1072 = vsub.f32 %v1049, %v1069
      %v1073 = vmul.f32 %v1070, 1.442695
      %v1074 = vpow.pop %v1073
      %v1075 = vmul.f32 %v1071, 1.442695
      %v1076 = vpow.pop %v1075
      %v1077 = vmul.f32 %v1072, 1.442695
      %v1078 = vpow.pop %v1077
      %v1079 = vrot.slane %v1074, 4
      %v1080 = vadd.f32 %v1074, %v1079
      %v1081 = vrot.slane %v1080, 2
      %v1082 = vadd.f32 %v1080, %v1081
      %v1083 = vrot.slane %v1082, 1
      %v1084 = vadd.f32 %v1082, %v1083
      %v1085 = vrot.slane %v1076, 4
      %v1086 = vadd.f32 %v1076, %v1085
      %v1087 = vrot.slane %v1086, 2
      %v1088 = vadd.f32 %v1086, %v1087
      %v1089 = vrot.slane %v1088, 1
      %v1090 = vadd.f32 %v1088, %v1089
      %v1091 = vrot.slane %v1078, 4
      %v1092 = vadd.f32 %v1078, %v1091
      %v1093 = vrot.slane %v1092, 2
      %v1094 = vadd.f32 %v1092, %v1093
      %v1095 = vrot.slane %v1094, 1
      %v1096 = vadd.f32 %v1094, %v1095
      %v1097 = vrcp.pop %v1084
      %v1098 = vrcp.pop %v1090
      %v1099 = vrcp.pop %v1096
      %v1100 = vmul.f32 %v1084, %v1097
      %v1101 = vmul.f32 %v1090, %v1098
      %v1102 = vmul.f32 %v1096, %v1099
      %v1103 = vsub.f32 2.0, %v1100
      %v1104 = vsub.f32 2.0, %v1101
      %v1105 = vsub.f32 2.0, %v1102
      %v1106 = vmul.f32 %v1097, %v1103
      %v1107 = vmul.f32 %v1098, %v1104
      %v1108 = vmul.f32 %v1099, %v1105
      %v1109 = vmul.f32 %v1074, %v1106
      %v1110 = vmul.f32 %v1076, %v1107
      %v1111 = vmul.f32 %v1078, %v1108
      %v1112 = vpack.c.bf16 %v1109, %v1109
      %v1113 = vpack.c.bf16 %v1110, %v1110
      %v1114 = vpack.c.bf16 %v1111, %v1111
      %v1115 = vpack.c.bf16 %v996, %v994
      %v1116 = vpack.c.bf16 %v1001, %v999
      %vm1117 = vcmask 64512
      %v1119 = vsel %vm1117, %v1115, 0
      %v1122 = vsel %vm1117, %v1116, 0
      %vm1124 = vcmask 1043456
      %v1126 = vsel %vm1124, %v1112, 0
      %v1129 = vsel %vm1124, %v1113, 0
      %v1132 = vsel %vm1124, %v1114, 0
      %1134 = vmatpush.bf16.msra.mxu0 0
      %1135 = vmatpush.bf16.msra.mxu0 0
      %1136 = vmatpush.bf16.msra.mxu0 0
      %1137 = vmatpush.bf16.msra.mxu0 0
      %1138 = vmatpush.bf16.msra.mxu0 0
      %1139 = vmatpush.bf16.msra.mxu0 0
      %1140 = vmatpush.bf16.msra.mxu0 0
      %1141 = vmatpush.bf16.msra.mxu0 %v1126
      %1142 = vmatmul.bf16.gmra.mxu0 %v1119
      %v1143 = vpop.f32.mrf.mxu0
      %v1144 = vadd.f32 0.0, %v1143
      %v1145 = vpop.f32.mrf.mxu0
      %v1146 = vadd.f32 0.0, %v1145
      %1147 = vmatmul.bf16.gmra.mxu0 %v1122
      %v1148 = vpop.f32.mrf.mxu0
      %v1149 = vadd.f32 0.0, %v1148
      %v1150 = vpop.f32.mrf.mxu0
      %v1151 = vadd.f32 0.0, %v1150
      %1152 = vdwg.mxu0
      %1153 = vmatpush.bf16.msra.mxu0 0
      %1154 = vmatpush.bf16.msra.mxu0 0
      %1155 = vmatpush.bf16.msra.mxu0 0
      %1156 = vmatpush.bf16.msra.mxu0 0
      %1157 = vmatpush.bf16.msra.mxu0 0
      %1158 = vmatpush.bf16.msra.mxu0 0
      %1159 = vmatpush.bf16.msra.mxu0 0
      %1160 = vmatpush.bf16.msra.mxu0 %v1129
      %1161 = vmatmul.bf16.gmra.mxu0 %v1119
      %v1162 = vpop.f32.mrf.mxu0
      %v1163 = vadd.f32 0.0, %v1162
      %v1164 = vpop.f32.mrf.mxu0
      %v1165 = vadd.f32 0.0, %v1164
      %1166 = vmatmul.bf16.gmra.mxu0 %v1122
      %v1167 = vpop.f32.mrf.mxu0
      %v1168 = vadd.f32 0.0, %v1167
      %v1169 = vpop.f32.mrf.mxu0
      %v1170 = vadd.f32 0.0, %v1169
      %1171 = vdwg.mxu0
      %1172 = vmatpush.bf16.msra.mxu0 0
      %1173 = vmatpush.bf16.msra.mxu0 0
      %1174 = vmatpush.bf16.msra.mxu0 0
      %1175 = vmatpush.bf16.msra.mxu0 0
      %1176 = vmatpush.bf16.msra.mxu0 0
      %1177 = vmatpush.bf16.msra.mxu0 0
      %1178 = vmatpush.bf16.msra.mxu0 0
      %1179 = vmatpush.bf16.msra.mxu0 %v1132
      %1180 = vmatmul.bf16.gmra.mxu0 %v1119
      %v1181 = vpop.f32.mrf.mxu0
      %v1182 = vadd.f32 0.0, %v1181
      %v1183 = vpop.f32.mrf.mxu0
      %v1184 = vadd.f32 0.0, %v1183
      %1185 = vmatmul.bf16.gmra.mxu0 %v1122
      %v1186 = vpop.f32.mrf.mxu0
      %v1187 = vadd.f32 0.0, %v1186
      %v1188 = vpop.f32.mrf.mxu0
      %v1189 = vadd.f32 0.0, %v1188
      %1190 = vdwg.mxu0
      %v1191 = vld [vmem:[%s6 + $0x10] sm:$0xf]
      %v1192 = vld [vmem:[%s6 + $0x14] sm:$0xf]
      %v1193 = vld [vmem:[%s6 + $0x18] sm:$0xf]
      %v1194 = vld [vmem:[%s6 + $0x1c] sm:$0xf]
      %v1195 = vpack.c.bf16 %v1146, %v1144
      %v1196 = vpack.c.bf16 %v1165, %v1163
      %v1197 = vpack.c.bf16 %v1184, %v1182
      %v1198 = vpack.c.bf16 %v1151, %v1149
      %v1199 = vpack.c.bf16 %v1170, %v1168
      %v1200 = vpack.c.bf16 %v1189, %v1187
      %v1205 = vunpack.c.l.b16 %v1191
      %v1206 = vunpack.c.l.b16 %v1192
      %v1207 = vunpack.c.l.b16 %v1193
      %v1208 = vunpack.c.l.b16 %v1194
      %v1209 = vpack.c.b16 %v1206, %v1205
      %v1210 = vpack.c.b16 %v1208, %v1207
      %v1212 = vsel %vm837, %v1209, 0
      %v1215 = vsel %vm837, %v1210, 0
      %1217 = vmatpush.bf16.msra.mxu0 0
      %1218 = vmatpush.bf16.msra.mxu0 0
      %1219 = vmatpush.bf16.msra.mxu0 0
      %1220 = vmatpush.bf16.msra.mxu0 0
      %1221 = vmatpush.bf16.msra.mxu0 0
      %1222 = vmatpush.bf16.msra.mxu0 0
      %1223 = vmatpush.bf16.msra.mxu0 %v1198
      %1224 = vmatpush.bf16.msra.mxu0 %v1195
      %1225 = vmatmul.bf16.gmra.mxu0 %v1212
      %v1226 = vpop.f32.mrf.mxu0
      %v1227 = vadd.f32 0.0, %v1226
      %v1228 = vpop.f32.mrf.mxu0
      %v1229 = vadd.f32 0.0, %v1228
      %1230 = vmatmul.bf16.gmra.mxu0 %v1215
      %v1231 = vpop.f32.mrf.mxu0
      %v1232 = vadd.f32 0.0, %v1231
      %v1233 = vpop.f32.mrf.mxu0
      %v1234 = vadd.f32 0.0, %v1233
      %1235 = vdwg.mxu0
      %1236 = vmatpush.bf16.msra.mxu0 0
      %1237 = vmatpush.bf16.msra.mxu0 0
      %1238 = vmatpush.bf16.msra.mxu0 0
      %1239 = vmatpush.bf16.msra.mxu0 0
      %1240 = vmatpush.bf16.msra.mxu0 0
      %1241 = vmatpush.bf16.msra.mxu0 0
      %1242 = vmatpush.bf16.msra.mxu0 %v1199
      %1243 = vmatpush.bf16.msra.mxu0 %v1196
      %1244 = vmatmul.bf16.gmra.mxu0 %v1212
      %v1245 = vpop.f32.mrf.mxu0
      %v1246 = vadd.f32 0.0, %v1245
      %v1247 = vpop.f32.mrf.mxu0
      %v1248 = vadd.f32 0.0, %v1247
      %1249 = vmatmul.bf16.gmra.mxu0 %v1215
      %v1250 = vpop.f32.mrf.mxu0
      %v1251 = vadd.f32 0.0, %v1250
      %v1252 = vpop.f32.mrf.mxu0
      %v1253 = vadd.f32 0.0, %v1252
      %1254 = vdwg.mxu0
      %1255 = vmatpush.bf16.msra.mxu0 0
      %1256 = vmatpush.bf16.msra.mxu0 0
      %1257 = vmatpush.bf16.msra.mxu0 0
      %1258 = vmatpush.bf16.msra.mxu0 0
      %1259 = vmatpush.bf16.msra.mxu0 0
      %1260 = vmatpush.bf16.msra.mxu0 0
      %1261 = vmatpush.bf16.msra.mxu0 %v1200
      %1262 = vmatpush.bf16.msra.mxu0 %v1197
      %1263 = vmatmul.bf16.gmra.mxu0 %v1212
      %v1264 = vpop.f32.mrf.mxu0
      %v1265 = vadd.f32 0.0, %v1264
      %v1266 = vpop.f32.mrf.mxu0
      %v1267 = vadd.f32 0.0, %v1266
      %1268 = vmatmul.bf16.gmra.mxu0 %v1215
      %v1269 = vpop.f32.mrf.mxu0
      %v1270 = vadd.f32 0.0, %v1269
      %v1271 = vpop.f32.mrf.mxu0
      %v1272 = vadd.f32 0.0, %v1271
      %1273 = vdwg.mxu0
      %v1274 = vadd.f32 %v781, %v1227
      %v1275 = vadd.f32 %v782, %v1246
      %v1276 = vadd.f32 %v783, %v1265
      %v1277 = vadd.f32 %v784, %v1229
      %v1278 = vadd.f32 %v785, %v1248
      %v1279 = vadd.f32 %v786, %v1267
      %v1280 = vadd.f32 %v787, %v1232
      %v1281 = vadd.f32 %v788, %v1251
      %v1282 = vadd.f32 %v789, %v1270
      %v1283 = vadd.f32 %v790, %v1234
      %v1284 = vadd.f32 %v791, %v1253
      %v1285 = vadd.f32 %v792, %v1272
      %1286 = vset.pattern.permute.xlu0 1
      %1287 = vperm.xlu0 %1286, %v803
      %v1288 = vpop.permute.xlu0 %1287
      %1290 = vset.pattern.permute.xlu0 1
      %1291 = vperm.xlu0 %1290, %v804
      %v1292 = vpop.permute.xlu0 %1291
      %1294 = vset.pattern.permute.xlu0 1
      %1295 = vperm.xlu0 %1294, %v805
      %v1296 = vpop.permute.xlu0 %1295
      %1298 = vset.pattern.permute.xlu0 1
      %1299 = vperm.xlu0 %1298, %v806
      %v1300 = vpop.permute.xlu0 %1299
      %v1302 = vadd.f32 %v1274, %v1288
      %v1303 = vadd.f32 %v1275, %v1288
      %v1304 = vadd.f32 %v1276, %v1288
      %v1305 = vadd.f32 %v1277, %v1292
      %v1306 = vadd.f32 %v1278, %v1292
      %v1307 = vadd.f32 %v1279, %v1292
      %v1308 = vadd.f32 %v1280, %v1296
      %v1309 = vadd.f32 %v1281, %v1296
      %v1310 = vadd.f32 %v1282, %v1296
      %v1311 = vadd.f32 %v1283, %v1300
      %v1312 = vadd.f32 %v1284, %v1300
      %v1313 = vadd.f32 %v1285, %v1300
      %v1314 = vld [vmem:[%s4] sm:$0x7]
      %v1316 = vperm.slane %v1314, 0
      %v1317 = vperm.slane %v1314, 1
      %v1318 = vperm.slane %v1314, 2
      %v1322 = vmul.f32 %v1302, %v1316
      %v1323 = vmul.f32 %v1303, %v1317
      %v1324 = vmul.f32 %v1304, %v1318
      %v1325 = vmul.f32 %v1305, %v1316
      %v1326 = vmul.f32 %v1306, %v1317
      %v1327 = vmul.f32 %v1307, %v1318
      %v1328 = vmul.f32 %v1308, %v1316
      %v1329 = vmul.f32 %v1309, %v1317
      %v1330 = vmul.f32 %v1310, %v1318
      %v1331 = vmul.f32 %v1311, %v1316
      %v1332 = vmul.f32 %v1312, %v1317
      %v1333 = vmul.f32 %v1313, %v1318
      %v1334 = vpack.c.bf16 %v1323, %v1322
      %v1335 = vpack.c.bf16 %v1324, %v1324
      %v1336 = vpack.c.bf16 %v1326, %v1325
      %v1337 = vpack.c.bf16 %v1327, %v1327
      %v1338 = vpack.c.bf16 %v1329, %v1328
      %v1339 = vpack.c.bf16 %v1330, %v1330
      %v1340 = vpack.c.bf16 %v1332, %v1331
      %v1341 = vpack.c.bf16 %v1333, %v1333
      %vm1342 = vcmask 191488
      %1343 = vst.msk [vmem:[#allocation2] sm:$0xf] %vm1342, 0
      %1344 = vst.msk [vmem:[#allocation2 + $0xc] sm:$0xf] %vm1342, 0
      %1345 = vst.msk [vmem:[#allocation2 + $0x18] sm:$0xf] %vm1342, 0
      %1346 = vst.msk [vmem:[#allocation2 + $0x24] sm:$0xf] %vm1342, 0
      %1347 = vst.msk [vmem:[#allocation2 + $0x30] sm:$0xf] %vm1342, 0
      %1348 = vst.msk [vmem:[#allocation2 + $0x3c] sm:$0xf] %vm1342, 0
      %1349 = vst.msk [vmem:[#allocation2 + $0x48] sm:$0xf] %vm1342, 0
      %1350 = vst.msk [vmem:[#allocation2 + $0x54] sm:$0xf] %vm1342, 0
      %1351 = vst.msk [vmem:[#allocation2 + $0x60] sm:$0xf] %vm1342, 0
      %1352 = vst.msk [vmem:[#allocation2 + $0x6c] sm:$0xf] %vm1342, 0
      %1353 = vst.msk [vmem:[#allocation2 + $0x78] sm:$0xf] %vm1342, 0
      %1354 = vst.msk [vmem:[#allocation2 + $0x84] sm:$0xf] %vm1342, 0
      %1355 = vst.msk [vmem:[#allocation2 + $0x90] sm:$0xf] %vm1342, 0
      %1356 = vst.msk [vmem:[#allocation2 + $0x9c] sm:$0xf] %vm1342, 0
      %1357 = vst.msk [vmem:[#allocation2 + $0xa8] sm:$0xf] %vm1342, 0
      %1358 = vst.msk [vmem:[#allocation2 + $0xb4] sm:$0xf] %vm1342, 0
      %1359 = vst.msk [vmem:[#allocation2 + $0xc0] sm:$0xf] %vm1342, 0
      %1360 = vst.msk [vmem:[#allocation2 + $0xcc] sm:$0xf] %vm1342, 0
      %1361 = vst.msk [vmem:[#allocation2 + $0xd8] sm:$0xf] %vm1342, 0
      %1362 = vst.msk [vmem:[#allocation2 + $0xe4] sm:$0xf] %vm1342, 0
      %1363 = vst.msk [vmem:[#allocation2 + $0xf0] sm:$0xf] %vm1342, 0
      %1364 = vst.msk [vmem:[#allocation2 + $0xfc] sm:$0xf] %vm1342, 0
      %1365 = vst.msk [vmem:[#allocation2 + $0x108] sm:$0xf] %vm1342, 0
      %1366 = vst.msk [vmem:[#allocation2 + $0x114] sm:$0xf] %vm1342, 0
      %1367 = vst.msk [vmem:[#allocation2 + $0x120] sm:$0xf] %vm1342, 0
      %1368 = vst.msk [vmem:[#allocation2 + $0x12c] sm:$0xf] %vm1342, 0
      %1369 = vst.msk [vmem:[#allocation2 + $0x138] sm:$0xf] %vm1342, 0
      %1370 = vst.msk [vmem:[#allocation2 + $0x144] sm:$0xf] %vm1342, 0
      %1371 = vst.msk [vmem:[#allocation2 + $0x150] sm:$0xf] %vm1342, 0
      %1372 = vst.msk [vmem:[#allocation2 + $0x15c] sm:$0xf] %vm1342, 0
      %1373 = vst.msk [vmem:[#allocation2 + $0x168] sm:$0xf] %vm1342, 0
      %1374 = vst.msk [vmem:[#allocation2 + $0x174] sm:$0xf] %vm1342, 0
      %1375 = vst.msk [vmem:[#allocation2 + $0x180] sm:$0xf] %vm1342, 0
      %1376 = vst.msk [vmem:[#allocation2 + $0x18c] sm:$0xf] %vm1342, 0
      %1377 = vst.msk [vmem:[#allocation2 + $0x198] sm:$0xf] %vm1342, 0
      %1378 = vst.msk [vmem:[#allocation2 + $0x1a4] sm:$0xf] %vm1342, 0
      %vm1379 = vcmask 1044288
      %1380 = vst.msk [vmem:[#allocation2 + $0x8] sm:$0xf] %vm1379, 0
      %1381 = vst.msk [vmem:[#allocation2 + $0x14] sm:$0xf] %vm1379, 0
      %1382 = vst.msk [vmem:[#allocation2 + $0x20] sm:$0xf] %vm1379, 0
      %1383 = vst.msk [vmem:[#allocation2 + $0x2c] sm:$0xf] %vm1379, 0
      %1384 = vst.msk [vmem:[#allocation2 + $0x38] sm:$0xf] %vm1379, 0
      %1385 = vst.msk [vmem:[#allocation2 + $0x44] sm:$0xf] %vm1379, 0
      %1386 = vst.msk [vmem:[#allocation2 + $0x50] sm:$0xf] %vm1379, 0
      %1387 = vst.msk [vmem:[#allocation2 + $0x5c] sm:$0xf] %vm1379, 0
      %1388 = vst.msk [vmem:[#allocation2 + $0x68] sm:$0xf] %vm1379, 0
      %1389 = vst.msk [vmem:[#allocation2 + $0x74] sm:$0xf] %vm1379, 0
      %1390 = vst.msk [vmem:[#allocation2 + $0x80] sm:$0xf] %vm1379, 0
      %1391 = vst.msk [vmem:[#allocation2 + $0x8c] sm:$0xf] %vm1379, 0
      %1392 = vst.msk [vmem:[#allocation2 + $0x98] sm:$0xf] %vm1379, 0
      %1393 = vst.msk [vmem:[#allocation2 + $0xa4] sm:$0xf] %vm1379, 0
      %1394 = vst.msk [vmem:[#allocation2 + $0xb0] sm:$0xf] %vm1379, 0
      %1395 = vst.msk [vmem:[#allocation2 + $0xbc] sm:$0xf] %vm1379, 0
      %1396 = vst.msk [vmem:[#allocation2 + $0xc8] sm:$0xf] %vm1379, 0
      %1397 = vst.msk [vmem:[#allocation2 + $0xd4] sm:$0xf] %vm1379, 0
      %1398 = vst.msk [vmem:[#allocation2 + $0xe0] sm:$0xf] %vm1379, 0
      %1399 = vst.msk [vmem:[#allocation2 + $0xec] sm:$0xf] %vm1379, 0
      %1400 = vst.msk [vmem:[#allocation2 + $0xf8] sm:$0xf] %vm1379, 0
      %1401 = vst.msk [vmem:[#allocation2 + $0x104] sm:$0xf] %vm1379, 0
      %1402 = vst.msk [vmem:[#allocation2 + $0x110] sm:$0xf] %vm1379, 0
      %1403 = vst.msk [vmem:[#allocation2 + $0x11c] sm:$0xf] %vm1379, 0
      %1404 = vst.msk [vmem:[#allocation2 + $0x128] sm:$0xf] %vm1379, 0
      %1405 = vst.msk [vmem:[#allocation2 + $0x134] sm:$0xf] %vm1379, 0
      %1406 = vst.msk [vmem:[#allocation2 + $0x140] sm:$0xf] %vm1379, 0
      %1407 = vst.msk [vmem:[#allocation2 + $0x14c] sm:$0xf] %vm1379, 0
      %1408 = vst.msk [vmem:[#allocation2 + $0x158] sm:$0xf] %vm1379, 0
      %1409 = vst.msk [vmem:[#allocation2 + $0x164] sm:$0xf] %vm1379, 0
      %1410 = vst.msk [vmem:[#allocation2 + $0x170] sm:$0xf] %vm1379, 0
      %1411 = vst.msk [vmem:[#allocation2 + $0x17c] sm:$0xf] %vm1379, 0
      %1412 = vst.msk [vmem:[#allocation2 + $0x188] sm:$0xf] %vm1379, 0
      %1413 = vst.msk [vmem:[#allocation2 + $0x194] sm:$0xf] %vm1379, 0
      %1414 = vst.msk [vmem:[#allocation2 + $0x1a0] sm:$0xf] %vm1379, 0
      %1415 = vst.msk [vmem:[#allocation2 + $0x1ac] sm:$0xf] %vm1379, 0
      %1424 = vrot.lane.b32.xlu0 %v1334, 19
      %v1425 = vpop.permute.xlu0 %1424
      %1426 = vrot.lane.b32.xlu0 %v1335, 19
      %v1427 = vpop.permute.xlu0 %1426
      %1428 = vrot.lane.b32.xlu0 %v1336, 19
      %v1429 = vpop.permute.xlu0 %1428
      %1430 = vrot.lane.b32.xlu0 %v1337, 19
      %v1431 = vpop.permute.xlu0 %1430
      %1432 = vrot.lane.b32.xlu0 %v1338, 19
      %v1433 = vpop.permute.xlu0 %1432
      %1434 = vrot.lane.b32.xlu0 %v1339, 19
      %v1435 = vpop.permute.xlu0 %1434
      %1436 = vrot.lane.b32.xlu0 %v1340, 19
      %v1437 = vpop.permute.xlu0 %1436
      %1438 = vrot.lane.b32.xlu0 %v1341, 19
      %v1439 = vpop.permute.xlu0 %1438
      %v1440 = vrot.slane %v1425, 4
      %v1441 = vrot.slane %v1429, 4
      %v1442 = vrot.slane %v1433, 4
      %v1443 = vrot.slane %v1437, 4
      %vm1444 = vcmask 154624
      %v1445 = vsel %vm1444, %v1440, %v1425
      %v1446 = vsel %vm1444, %v1440, %v1427
      %v1447 = vsel %vm1444, %v1441, %v1429
      %v1448 = vsel %vm1444, %v1441, %v1431
      %v1449 = vsel %vm1444, %v1442, %v1433
      %v1450 = vsel %vm1444, %v1442, %v1435
      %v1451 = vsel %vm1444, %v1443, %v1437
      %v1452 = vsel %vm1444, %v1443, %v1439
      %vm1461 = vcmask 1043608
      %vm1462 = vcmask 1047556
      %vm1463 = vmor %vm1462, %vm1461
      %1464 = vst.msk [vmem:[#allocation2] sm:$0xff] %vm1463, %v1445
      %1465 = vst [vmem:[#allocation2 + $0x8] sm:$0xf] %v1446
      %1466 = vst.msk [vmem:[#allocation2 + $0xc] sm:$0xff] %vm1463, %v1447
      %1467 = vst [vmem:[#allocation2 + $0x14] sm:$0xf] %v1448
      %1468 = vst.msk [vmem:[#allocation2 + $0x18] sm:$0xff] %vm1463, %v1449
      %1469 = vst [vmem:[#allocation2 + $0x20] sm:$0xf] %v1450
      %1470 = vst.msk [vmem:[#allocation2 + $0x24] sm:$0xff] %vm1463, %v1451
      %1471 = vst [vmem:[#allocation2 + $0x2c] sm:$0xf] %v1452
      %1472 = vrot.lane.b32.xlu0 %v1334, 18
      %v1473 = vpop.permute.xlu0 %1472
      %1474 = vrot.lane.b32.xlu0 %v1335, 18
      %v1475 = vpop.permute.xlu0 %1474
      %1476 = vrot.lane.b32.xlu0 %v1336, 18
      %v1477 = vpop.permute.xlu0 %1476
      %1478 = vrot.lane.b32.xlu0 %v1337, 18
      %v1479 = vpop.permute.xlu0 %1478
      %1480 = vrot.lane.b32.xlu0 %v1338, 18
      %v1481 = vpop.permute.xlu0 %1480
      %1482 = vrot.lane.b32.xlu0 %v1339, 18
      %v1483 = vpop.permute.xlu0 %1482
      %1484 = vrot.lane.b32.xlu0 %v1340, 18
      %v1485 = vpop.permute.xlu0 %1484
      %1486 = vrot.lane.b32.xlu0 %v1341, 18
      %v1487 = vpop.permute.xlu0 %1486
      %v1488 = vrot.slane %v1473, 4
      %v1489 = vrot.slane %v1477, 4
      %v1490 = vrot.slane %v1481, 4
      %v1491 = vrot.slane %v1485, 4
      %vm1492 = vcmask 146432
      %v1493 = vsel %vm1492, %v1488, %v1473
      %v1494 = vsel %vm1492, %v1488, %v1475
      %v1495 = vsel %vm1492, %v1489, %v1477
      %v1496 = vsel %vm1492, %v1489, %v1479
      %v1497 = vsel %vm1492, %v1490, %v1481
      %v1498 = vsel %vm1492, %v1490, %v1483
      %v1499 = vsel %vm1492, %v1491, %v1485
      %v1500 = vsel %vm1492, %v1491, %v1487
      %vm1509 = vcmask 1043600
      %vm1510 = vmor %vm1462, %vm1509
      %1511 = vst.msk [vmem:[#allocation2 + $0x30] sm:$0xff] %vm1510, %v1493
      %1512 = vst [vmem:[#allocation2 + $0x38] sm:$0xf] %v1494
      %1513 = vst.msk [vmem:[#allocation2 + $0x3c] sm:$0xff] %vm1510, %v1495
      %1514 = vst [vmem:[#allocation2 + $0x44] sm:$0xf] %v1496
      %1515 = vst.msk [vmem:[#allocation2 + $0x48] sm:$0xff] %vm1510, %v1497
      %1516 = vst [vmem:[#allocation2 + $0x50] sm:$0xf] %v1498
      %1517 = vst.msk [vmem:[#allocation2 + $0x54] sm:$0xff] %vm1510, %v1499
      %1518 = vst [vmem:[#allocation2 + $0x5c] sm:$0xf] %v1500
      %1519 = vrot.lane.b32.xlu0 %v1334, 17
      %v1520 = vpop.permute.xlu0 %1519
      %1521 = vrot.lane.b32.xlu0 %v1335, 17
      %v1522 = vpop.permute.xlu0 %1521
      %1523 = vrot.lane.b32.xlu0 %v1336, 17
      %v1524 = vpop.permute.xlu0 %1523
      %1525 = vrot.lane.b32.xlu0 %v1337, 17
      %v1526 = vpop.permute.xlu0 %1525
      %1527 = vrot.lane.b32.xlu0 %v1338, 17
      %v1528 = vpop.permute.xlu0 %1527
      %1529 = vrot.lane.b32.xlu0 %v1339, 17
      %v1530 = vpop.permute.xlu0 %1529
      %1531 = vrot.lane.b32.xlu0 %v1340, 17
      %v1532 = vpop.permute.xlu0 %1531
      %1533 = vrot.lane.b32.xlu0 %v1341, 17
      %v1534 = vpop.permute.xlu0 %1533
      %v1535 = vrot.slane %v1520, 4
      %v1536 = vrot.slane %v1524, 4
      %v1537 = vrot.slane %v1528, 4
      %v1538 = vrot.slane %v1532, 4
      %vm1539 = vcmask 138240
      %v1540 = vsel %vm1539, %v1535, %v1520
      %v1541 = vsel %vm1539, %v1535, %v1522
      %v1542 = vsel %vm1539, %v1536, %v1524
      %v1543 = vsel %vm1539, %v1536, %v1526
      %v1544 = vsel %vm1539, %v1537, %v1528
      %v1545 = vsel %vm1539, %v1537, %v1530
      %v1546 = vsel %vm1539, %v1538, %v1532
      %v1547 = vsel %vm1539, %v1538, %v1534
      %vm1556 = vcmask 1043592
      %vm1557 = vmor %vm1462, %vm1556
      %1558 = vst.msk [vmem:[#allocation2 + $0x60] sm:$0xff] %vm1557, %v1540
      %1559 = vst [vmem:[#allocation2 + $0x68] sm:$0xf] %v1541
      %1560 = vst.msk [vmem:[#allocation2 + $0x6c] sm:$0xff] %vm1557, %v1542
      %1561 = vst [vmem:[#allocation2 + $0x74] sm:$0xf] %v1543
      %1562 = vst.msk [vmem:[#allocation2 + $0x78] sm:$0xff] %vm1557, %v1544
      %1563 = vst [vmem:[#allocation2 + $0x80] sm:$0xf] %v1545
      %1564 = vst.msk [vmem:[#allocation2 + $0x84] sm:$0xff] %vm1557, %v1546
      %1565 = vst [vmem:[#allocation2 + $0x8c] sm:$0xf] %v1547
      %1566 = vrot.lane.b32.xlu0 %v1334, 1
      %v1567 = vpop.permute.xlu0 %1566
      %1568 = vrot.lane.b32.xlu0 %v1335, 1
      %v1569 = vpop.permute.xlu0 %1568
      %1570 = vrot.lane.b32.xlu0 %v1336, 1
      %v1571 = vpop.permute.xlu0 %1570
      %1572 = vrot.lane.b32.xlu0 %v1337, 1
      %v1573 = vpop.permute.xlu0 %1572
      %1574 = vrot.lane.b32.xlu0 %v1338, 1
      %v1575 = vpop.permute.xlu0 %1574
      %1576 = vrot.lane.b32.xlu0 %v1339, 1
      %v1577 = vpop.permute.xlu0 %1576
      %1578 = vrot.lane.b32.xlu0 %v1340, 1
      %v1579 = vpop.permute.xlu0 %1578
      %1580 = vrot.lane.b32.xlu0 %v1341, 1
      %v1581 = vpop.permute.xlu0 %1580
      %v1582 = vrot.slane %v1567, 4
      %v1583 = vrot.slane %v1571, 4
      %v1584 = vrot.slane %v1575, 4
      %v1585 = vrot.slane %v1579, 4
      %vm1586 = vcmask 7168
      %v1587 = vsel %vm1586, %v1582, %v1567
      %v1588 = vsel %vm1586, %v1582, %v1569
      %v1589 = vsel %vm1586, %v1583, %v1571
      %v1590 = vsel %vm1586, %v1583, %v1573
      %v1591 = vsel %vm1586, %v1584, %v1575
      %v1592 = vsel %vm1586, %v1584, %v1577
      %v1593 = vsel %vm1586, %v1585, %v1579
      %v1594 = vsel %vm1586, %v1585, %v1581
      %vm1603 = vcmask 1043464
      %vm1604 = vmor %vm1462, %vm1603
      %1605 = vst.msk [vmem:[#allocation2 + $0x90] sm:$0xff] %vm1604, %v1587
      %1606 = vst [vmem:[#allocation2 + $0x98] sm:$0xf] %v1588
      %1607 = vst.msk [vmem:[#allocation2 + $0x9c] sm:$0xff] %vm1604, %v1589
      %1608 = vst [vmem:[#allocation2 + $0xa4] sm:$0xf] %v1590
      %1609 = vst.msk [vmem:[#allocation2 + $0xa8] sm:$0xff] %vm1604, %v1591
      %1610 = vst [vmem:[#allocation2 + $0xb0] sm:$0xf] %v1592
      %1611 = vst.msk [vmem:[#allocation2 + $0xb4] sm:$0xff] %vm1604, %v1593
      %1612 = vst [vmem:[#allocation2 + $0xbc] sm:$0xf] %v1594
      %1613 = vst [vmem:[#allocation2 + $0xc0] sm:$0xff] %v1334
      %1614 = vst [vmem:[#allocation2 + $0xc8] sm:$0xf] %v1335
      %1615 = vst [vmem:[#allocation2 + $0xcc] sm:$0xff] %v1336
      %1616 = vst [vmem:[#allocation2 + $0xd4] sm:$0xf] %v1337
      %1617 = vst [vmem:[#allocation2 + $0xd8] sm:$0xff] %v1338
      %1618 = vst [vmem:[#allocation2 + $0xe0] sm:$0xf] %v1339
      %1619 = vst [vmem:[#allocation2 + $0xe4] sm:$0xff] %v1340
      %1620 = vst [vmem:[#allocation2 + $0xec] sm:$0xf] %v1341
      %1621 = vrot.lane.b32.xlu0 %v1334, 127
      %v1622 = vpop.permute.xlu0 %1621
      %1623 = vrot.lane.b32.xlu0 %v1335, 127
      %v1624 = vpop.permute.xlu0 %1623
      %1625 = vrot.lane.b32.xlu0 %v1336, 127
      %v1626 = vpop.permute.xlu0 %1625
      %1627 = vrot.lane.b32.xlu0 %v1337, 127
      %v1628 = vpop.permute.xlu0 %1627
      %1629 = vrot.lane.b32.xlu0 %v1338, 127
      %v1630 = vpop.permute.xlu0 %1629
      %1631 = vrot.lane.b32.xlu0 %v1339, 127
      %v1632 = vpop.permute.xlu0 %1631
      %1633 = vrot.lane.b32.xlu0 %v1340, 127
      %v1634 = vpop.permute.xlu0 %1633
      %1635 = vrot.lane.b32.xlu0 %v1341, 127
      %v1636 = vpop.permute.xlu0 %1635
      %v1637 = vrot.slane %v1622, 4
      %v1638 = vrot.slane %v1624, 4
      %v1639 = vrot.slane %v1626, 4
      %v1640 = vrot.slane %v1628, 4
      %v1641 = vrot.slane %v1630, 4
      %v1642 = vrot.slane %v1632, 4
      %v1643 = vrot.slane %v1634, 4
      %v1644 = vrot.slane %v1636, 4
      %vm1645 = vcmask 1043456
      %v1646 = vsel %vm1645, %v1637, %v1638
      %vm1647 = vcmask 1039360
      %v1648 = vsel %vm1647, %v1622, %v1646
      %v1649 = vsel %vm1645, %v1639, %v1640
      %v1650 = vsel %vm1647, %v1626, %v1649
      %v1651 = vsel %vm1645, %v1641, %v1642
      %v1652 = vsel %vm1647, %v1630, %v1651
      %v1653 = vsel %vm1645, %v1643, %v1644
      %v1654 = vsel %vm1647, %v1634, %v1653
      %1663 = vst [vmem:[#allocation2 + $0xf0] sm:$0xff] %v1648
      %vm1664 = vcmask 1035264
      %1665 = vst.msk [vmem:[#allocation2 + $0xf8] sm:$0xf] %vm1664, %v1624
      %1666 = vst [vmem:[#allocation2 + $0xfc] sm:$0xff] %v1650
      %1667 = vst.msk [vmem:[#allocation2 + $0x104] sm:$0xf] %vm1664, %v1628
      %1668 = vst [vmem:[#allocation2 + $0x108] sm:$0xff] %v1652
      %1669 = vst.msk [vmem:[#allocation2 + $0x110] sm:$0xf] %vm1664, %v1632
      %1670 = vst [vmem:[#allocation2 + $0x114] sm:$0xff] %v1654
      %1671 = vst.msk [vmem:[#allocation2 + $0x11c] sm:$0xf] %vm1664, %v1636
      %1672 = vrot.lane.b32.xlu0 %v1334, 111
      %v1673 = vpop.permute.xlu0 %1672
      %1674 = vrot.lane.b32.xlu0 %v1335, 111
      %v1675 = vpop.permute.xlu0 %1674
      %1676 = vrot.lane.b32.xlu0 %v1336, 111
      %v1677 = vpop.permute.xlu0 %1676
      %1678 = vrot.lane.b32.xlu0 %v1337, 111
      %v1679 = vpop.permute.xlu0 %1678
      %1680 = vrot.lane.b32.xlu0 %v1338, 111
      %v1681 = vpop.permute.xlu0 %1680
      %1682 = vrot.lane.b32.xlu0 %v1339, 111
      %v1683 = vpop.permute.xlu0 %1682
      %1684 = vrot.lane.b32.xlu0 %v1340, 111
      %v1685 = vpop.permute.xlu0 %1684
      %1686 = vrot.lane.b32.xlu0 %v1341, 111
      %v1687 = vpop.permute.xlu0 %1686
      %v1688 = vrot.slane %v1673, 4
      %v1689 = vrot.slane %v1675, 4
      %v1690 = vrot.slane %v1677, 4
      %v1691 = vrot.slane %v1679, 4
      %v1692 = vrot.slane %v1681, 4
      %v1693 = vrot.slane %v1683, 4
      %v1694 = vrot.slane %v1685, 4
      %v1695 = vrot.slane %v1687, 4
      %v1696 = vsel %vm1645, %v1688, %v1689
      %vm1697 = vcmask 908288
      %v1698 = vsel %vm1697, %v1673, %v1696
      %v1699 = vsel %vm1645, %v1690, %v1691
      %v1700 = vsel %vm1697, %v1677, %v1699
      %v1701 = vsel %vm1645, %v1692, %v1693
      %v1702 = vsel %vm1697, %v1681, %v1701
      %v1703 = vsel %vm1645, %v1694, %v1695
      %v1704 = vsel %vm1697, %v1685, %v1703
      %1713 = vst [vmem:[#allocation2 + $0x120] sm:$0xff] %v1698
      %vm1714 = vcmask 904192
      %1715 = vst.msk [vmem:[#allocation2 + $0x128] sm:$0xf] %vm1714, %v1675
      %1716 = vst [vmem:[#allocation2 + $0x12c] sm:$0xff] %v1700
      %1717 = vst.msk [vmem:[#allocation2 + $0x134] sm:$0xf] %vm1714, %v1679
      %1718 = vst [vmem:[#allocation2 + $0x138] sm:$0xff] %v1702
      %1719 = vst.msk [vmem:[#allocation2 + $0x140] sm:$0xf] %vm1714, %v1683
      %1720 = vst [vmem:[#allocation2 + $0x144] sm:$0xff] %v1704
      %1721 = vst.msk [vmem:[#allocation2 + $0x14c] sm:$0xf] %vm1714, %v1687
      %1722 = vrot.lane.b32.xlu0 %v1334, 110
      %v1723 = vpop.permute.xlu0 %1722
      %1724 = vrot.lane.b32.xlu0 %v1335, 110
      %v1725 = vpop.permute.xlu0 %1724
      %1726 = vrot.lane.b32.xlu0 %v1336, 110
      %v1727 = vpop.permute.xlu0 %1726
      %1728 = vrot.lane.b32.xlu0 %v1337, 110
      %v1729 = vpop.permute.xlu0 %1728
      %1730 = vrot.lane.b32.xlu0 %v1338, 110
      %v1731 = vpop.permute.xlu0 %1730
      %1732 = vrot.lane.b32.xlu0 %v1339, 110
      %v1733 = vpop.permute.xlu0 %1732
      %1734 = vrot.lane.b32.xlu0 %v1340, 110
      %v1735 = vpop.permute.xlu0 %1734
      %1736 = vrot.lane.b32.xlu0 %v1341, 110
      %v1737 = vpop.permute.xlu0 %1736
      %v1738 = vrot.slane %v1723, 4
      %v1739 = vrot.slane %v1725, 4
      %v1740 = vrot.slane %v1727, 4
      %v1741 = vrot.slane %v1729, 4
      %v1742 = vrot.slane %v1731, 4
      %v1743 = vrot.slane %v1733, 4
      %v1744 = vrot.slane %v1735, 4
      %v1745 = vrot.slane %v1737, 4
      %v1746 = vsel %vm1645, %v1738, %v1739
      %vm1747 = vcmask 900096
      %v1748 = vsel %vm1747, %v1723, %v1746
      %v1749 = vsel %vm1645, %v1740, %v1741
      %v1750 = vsel %vm1747, %v1727, %v1749
      %v1751 = vsel %vm1645, %v1742, %v1743
      %v1752 = vsel %vm1747, %v1731, %v1751
      %v1753 = vsel %vm1645, %v1744, %v1745
      %v1754 = vsel %vm1747, %v1735, %v1753
      %1763 = vst [vmem:[#allocation2 + $0x150] sm:$0xff] %v1748
      %vm1764 = vcmask 896000
      %1765 = vst.msk [vmem:[#allocation2 + $0x158] sm:$0xf] %vm1764, %v1725
      %1766 = vst [vmem:[#allocation2 + $0x15c] sm:$0xff] %v1750
      %1767 = vst.msk [vmem:[#allocation2 + $0x164] sm:$0xf] %vm1764, %v1729
      %1768 = vst [vmem:[#allocation2 + $0x168] sm:$0xff] %v1752
      %1769 = vst.msk [vmem:[#allocation2 + $0x170] sm:$0xf] %vm1764, %v1733
      %1770 = vst [vmem:[#allocation2 + $0x174] sm:$0xff] %v1754
      %1771 = vst.msk [vmem:[#allocation2 + $0x17c] sm:$0xf] %vm1764, %v1737
      %1772 = vrot.lane.b32.xlu0 %v1334, 109
      %v1773 = vpop.permute.xlu0 %1772
      %1774 = vrot.lane.b32.xlu0 %v1335, 109
      %v1775 = vpop.permute.xlu0 %1774
      %1776 = vrot.lane.b32.xlu0 %v1336, 109
      %v1777 = vpop.permute.xlu0 %1776
      %1778 = vrot.lane.b32.xlu0 %v1337, 109
      %v1779 = vpop.permute.xlu0 %1778
      %1780 = vrot.lane.b32.xlu0 %v1338, 109
      %v1781 = vpop.permute.xlu0 %1780
      %1782 = vrot.lane.b32.xlu0 %v1339, 109
      %v1783 = vpop.permute.xlu0 %1782
      %1784 = vrot.lane.b32.xlu0 %v1340, 109
      %v1785 = vpop.permute.xlu0 %1784
      %1786 = vrot.lane.b32.xlu0 %v1341, 109
      %v1787 = vpop.permute.xlu0 %1786
      %v1788 = vrot.slane %v1773, 4
      %v1789 = vrot.slane %v1775, 4
      %v1790 = vrot.slane %v1777, 4
      %v1791 = vrot.slane %v1779, 4
      %v1792 = vrot.slane %v1781, 4
      %v1793 = vrot.slane %v1783, 4
      %v1794 = vrot.slane %v1785, 4
      %v1795 = vrot.slane %v1787, 4
      %v1796 = vsel %vm1645, %v1788, %v1789
      %vm1797 = vcmask 891904
      %v1798 = vsel %vm1797, %v1773, %v1796
      %v1799 = vsel %vm1645, %v1790, %v1791
      %v1800 = vsel %vm1797, %v1777, %v1799
      %v1801 = vsel %vm1645, %v1792, %v1793
      %v1802 = vsel %vm1797, %v1781, %v1801
      %v1803 = vsel %vm1645, %v1794, %v1795
      %v1804 = vsel %vm1797, %v1785, %v1803
      %1813 = vst [vmem:[#allocation2 + $0x180] sm:$0xff] %v1798
      %vm1814 = vcmask 887808
      %1815 = vst.msk [vmem:[#allocation2 + $0x188] sm:$0xf] %vm1814, %v1775
      %1816 = vst [vmem:[#allocation2 + $0x18c] sm:$0xff] %v1800
      %1817 = vst.msk [vmem:[#allocation2 + $0x194] sm:$0xf] %vm1814, %v1779
      %1818 = vst [vmem:[#allocation2 + $0x198] sm:$0xff] %v1802
      %1819 = vst.msk [vmem:[#allocation2 + $0x1a0] sm:$0xf] %vm1814, %v1783
      %1820 = vst [vmem:[#allocation2 + $0x1a4] sm:$0xff] %v1804
      %1821 = vst.msk [vmem:[#allocation2 + $0x1ac] sm:$0xf] %vm1814, %v1787
      %v1822 = vld [vmem:[%s7] sm:$0x3f]
      %v1823 = vld [vmem:[#allocation2] sm:$0xff]
      %v1824 = vld [vmem:[#allocation2 + $0x8] sm:$0xf]
      %v1825 = vld [vmem:[#allocation2 + $0xc] sm:$0xff]
      %v1826 = vld [vmem:[#allocation2 + $0x14] sm:$0xf]
      %v1827 = vld [vmem:[#allocation2 + $0x18] sm:$0xff]
      %v1828 = vld [vmem:[#allocation2 + $0x20] sm:$0xf]
      %v1829 = vld [vmem:[#allocation2 + $0x24] sm:$0xff]
      %v1830 = vld [vmem:[#allocation2 + $0x2c] sm:$0xf]
      %v1831 = vld [vmem:[#allocation2 + $0x30] sm:$0xff]
      %v1832 = vld [vmem:[#allocation2 + $0x38] sm:$0xf]
      %v1833 = vld [vmem:[#allocation2 + $0x3c] sm:$0xff]
      %v1834 = vld [vmem:[#allocation2 + $0x44] sm:$0xf]
      %v1835 = vld [vmem:[#allocation2 + $0x48] sm:$0xff]
      %v1836 = vld [vmem:[#allocation2 + $0x50] sm:$0xf]
      %v1837 = vld [vmem:[#allocation2 + $0x54] sm:$0xff]
      %v1838 = vld [vmem:[#allocation2 + $0x5c] sm:$0xf]
      %v1839 = vld [vmem:[#allocation2 + $0x60] sm:$0xff]
      %v1840 = vld [vmem:[#allocation2 + $0x68] sm:$0xf]
      %v1841 = vld [vmem:[#allocation2 + $0x6c] sm:$0xff]
      %v1842 = vld [vmem:[#allocation2 + $0x74] sm:$0xf]
      %v1843 = vld [vmem:[#allocation2 + $0x78] sm:$0xff]
      %v1844 = vld [vmem:[#allocation2 + $0x80] sm:$0xf]
      %v1845 = vld [vmem:[#allocation2 + $0x84] sm:$0xff]
      %v1846 = vld [vmem:[#allocation2 + $0x8c] sm:$0xf]
      %v1847 = vld [vmem:[#allocation2 + $0x90] sm:$0xff]
      %v1848 = vld [vmem:[#allocation2 + $0x98] sm:$0xf]
      %v1849 = vld [vmem:[#allocation2 + $0x9c] sm:$0xff]
      %v1850 = vld [vmem:[#allocation2 + $0xa4] sm:$0xf]
      %v1851 = vld [vmem:[#allocation2 + $0xa8] sm:$0xff]
      %v1852 = vld [vmem:[#allocation2 + $0xb0] sm:$0xf]
      %v1853 = vld [vmem:[#allocation2 + $0xb4] sm:$0xff]
      %v1854 = vld [vmem:[#allocation2 + $0xbc] sm:$0xf]
      %v1855 = vld [vmem:[#allocation2 + $0xc0] sm:$0xff]
      %v1856 = vld [vmem:[#allocation2 + $0xc8] sm:$0xf]
      %v1857 = vld [vmem:[#allocation2 + $0xcc] sm:$0xff]
      %v1858 = vld [vmem:[#allocation2 + $0xd4] sm:$0xf]
      %v1859 = vld [vmem:[#allocation2 + $0xd8] sm:$0xff]
      %v1860 = vld [vmem:[#allocation2 + $0xe0] sm:$0xf]
      %v1861 = vld [vmem:[#allocation2 + $0xe4] sm:$0xff]
      %v1862 = vld [vmem:[#allocation2 + $0xec] sm:$0xf]
      %v1863 = vld [vmem:[#allocation2 + $0xf0] sm:$0xff]
      %v1864 = vld [vmem:[#allocation2 + $0xf8] sm:$0xf]
      %v1865 = vld [vmem:[#allocation2 + $0xfc] sm:$0xff]
      %v1866 = vld [vmem:[#allocation2 + $0x104] sm:$0xf]
      %v1867 = vld [vmem:[#allocation2 + $0x108] sm:$0xff]
      %v1868 = vld [vmem:[#allocation2 + $0x110] sm:$0xf]
      %v1869 = vld [vmem:[#allocation2 + $0x114] sm:$0xff]
      %v1870 = vld [vmem:[#allocation2 + $0x11c] sm:$0xf]
      %v1871 = vld [vmem:[#allocation2 + $0x120] sm:$0xff]
      %v1872 = vld [vmem:[#allocation2 + $0x128] sm:$0xf]
      %v1873 = vld [vmem:[#allocation2 + $0x12c] sm:$0xff]
      %v1874 = vld [vmem:[#allocation2 + $0x134] sm:$0xf]
      %v1875 = vld [vmem:[#allocation2 + $0x138] sm:$0xff]
      %v1876 = vld [vmem:[#allocation2 + $0x140] sm:$0xf]
      %v1877 = vld [vmem:[#allocation2 + $0x144] sm:$0xff]
      %v1878 = vld [vmem:[#allocation2 + $0x14c] sm:$0xf]
      %v1879 = vld [vmem:[#allocation2 + $0x150] sm:$0xff]
      %v1880 = vld [vmem:[#allocation2 + $0x158] sm:$0xf]
      %v1881 = vld [vmem:[#allocation2 + $0x15c] sm:$0xff]
      %v1882 = vld [vmem:[#allocation2 + $0x164] sm:$0xf]
      %v1883 = vld [vmem:[#allocation2 + $0x168] sm:$0xff]
      %v1884 = vld [vmem:[#allocation2 + $0x170] sm:$0xf]
      %v1885 = vld [vmem:[#allocation2 + $0x174] sm:$0xff]
      %v1886 = vld [vmem:[#allocation2 + $0x17c] sm:$0xf]
      %v1887 = vld [vmem:[#allocation2 + $0x180] sm:$0xff]
      %v1888 = vld [vmem:[#allocation2 + $0x188] sm:$0xf]
      %v1889 = vld [vmem:[#allocation2 + $0x18c] sm:$0xff]
      %v1890 = vld [vmem:[#allocation2 + $0x194] sm:$0xf]
      %v1891 = vld [vmem:[#allocation2 + $0x198] sm:$0xff]
      %v1892 = vld [vmem:[#allocation2 + $0x1a0] sm:$0xf]
      %v1893 = vld [vmem:[#allocation2 + $0x1a4] sm:$0xff]
      %v1894 = vld [vmem:[#allocation2 + $0x1ac] sm:$0xf]
      %1896 = vst [vmem:[#allocation1] ss:$4 sm:$0xff] %v1822
      %v1897 = vld.sshfl [vmem:[#allocation1] sm:$0xff pattern:$0x73625140]
      %v1898 = vld.sshfl [vmem:[#allocation1 + $0x8] sm:$0xff pattern:$0x73625140]
      %v1899 = vld.sshfl [vmem:[#allocation1 + $0x10] sm:$0xff pattern:$0x73625140]
      %v1974 = vunpack.c.l.b16 %v1823
      %v1975 = vunpack.c.h.b16 %v1823
      %v1976 = vunpack.c.l.b16 %v1824
      %v1977 = vunpack.c.l.b16 %v1825
      %v1978 = vunpack.c.h.b16 %v1825
      %v1979 = vunpack.c.l.b16 %v1826
      %v1980 = vunpack.c.l.b16 %v1827
      %v1981 = vunpack.c.h.b16 %v1827
      %v1982 = vunpack.c.l.b16 %v1828
      %v1983 = vunpack.c.l.b16 %v1829
      %v1984 = vunpack.c.h.b16 %v1829
      %v1985 = vunpack.c.l.b16 %v1830
      %v1986 = vunpack.c.l.b16 %v1831
      %v1987 = vunpack.c.h.b16 %v1831
      %v1988 = vunpack.c.l.b16 %v1832
      %v1989 = vunpack.c.l.b16 %v1833
      %v1990 = vunpack.c.h.b16 %v1833
      %v1991 = vunpack.c.l.b16 %v1834
      %v1992 = vunpack.c.l.b16 %v1835
      %v1993 = vunpack.c.h.b16 %v1835
      %v1994 = vunpack.c.l.b16 %v1836
      %v1995 = vunpack.c.l.b16 %v1837
      %v1996 = vunpack.c.h.b16 %v1837
      %v1997 = vunpack.c.l.b16 %v1838
      %v1998 = vunpack.c.l.b16 %v1839
      %v1999 = vunpack.c.h.b16 %v1839
      %v2000 = vunpack.c.l.b16 %v1840
      %v2001 = vunpack.c.l.b16 %v1841
      %v2002 = vunpack.c.h.b16 %v1841
      %v2003 = vunpack.c.l.b16 %v1842
      %v2004 = vunpack.c.l.b16 %v1843
      %v2005 = vunpack.c.h.b16 %v1843
      %v2006 = vunpack.c.l.b16 %v1844
      %v2007 = vunpack.c.l.b16 %v1845
      %v2008 = vunpack.c.h.b16 %v1845
      %v2009 = vunpack.c.l.b16 %v1846
      %v2010 = vunpack.c.l.b16 %v1847
      %v2011 = vunpack.c.h.b16 %v1847
      %v2012 = vunpack.c.l.b16 %v1848
      %v2013 = vunpack.c.l.b16 %v1849
      %v2014 = vunpack.c.h.b16 %v1849
      %v2015 = vunpack.c.l.b16 %v1850
      %v2016 = vunpack.c.l.b16 %v1851
      %v2017 = vunpack.c.h.b16 %v1851
      %v2018 = vunpack.c.l.b16 %v1852
      %v2019 = vunpack.c.l.b16 %v1853
      %v2020 = vunpack.c.h.b16 %v1853
      %v2021 = vunpack.c.l.b16 %v1854
      %v2022 = vunpack.c.l.b16 %v1855
      %v2023 = vunpack.c.h.b16 %v1855
      %v2024 = vunpack.c.l.b16 %v1856
      %v2025 = vunpack.c.l.b16 %v1857
      %v2026 = vunpack.c.h.b16 %v1857
      %v2027 = vunpack.c.l.b16 %v1858
      %v2028 = vunpack.c.l.b16 %v1859
      %v2029 = vunpack.c.h.b16 %v1859
      %v2030 = vunpack.c.l.b16 %v1860
      %v2031 = vunpack.c.l.b16 %v1861
      %v2032 = vunpack.c.h.b16 %v1861
      %v2033 = vunpack.c.l.b16 %v1862
      %v2034 = vunpack.c.l.b16 %v1863
      %v2035 = vunpack.c.h.b16 %v1863
      %v2036 = vunpack.c.l.b16 %v1864
      %v2037 = vunpack.c.l.b16 %v1865
      %v2038 = vunpack.c.h.b16 %v1865
      %v2039 = vunpack.c.l.b16 %v1866
      %v2040 = vunpack.c.l.b16 %v1867
      %v2041 = vunpack.c.h.b16 %v1867
      %v2042 = vunpack.c.l.b16 %v1868
      %v2043 = vunpack.c.l.b16 %v1869
      %v2044 = vunpack.c.h.b16 %v1869
      %v2045 = vunpack.c.l.b16 %v1870
      %v2046 = vunpack.c.l.b16 %v1871
      %v2047 = vunpack.c.h.b16 %v1871
      %v2048 = vunpack.c.l.b16 %v1872
      %v2049 = vunpack.c.l.b16 %v1873
      %v2050 = vunpack.c.h.b16 %v1873
      %v2051 = vunpack.c.l.b16 %v1874
      %v2052 = vunpack.c.l.b16 %v1875
      %v2053 = vunpack.c.h.b16 %v1875
      %v2054 = vunpack.c.l.b16 %v1876
      %v2055 = vunpack.c.l.b16 %v1877
      %v2056 = vunpack.c.h.b16 %v1877
      %v2057 = vunpack.c.l.b16 %v1878
      %v2058 = vunpack.c.l.b16 %v1879
      %v2059 = vunpack.c.h.b16 %v1879
      %v2060 = vunpack.c.l.b16 %v1880
      %v2061 = vunpack.c.l.b16 %v1881
      %v2062 = vunpack.c.h.b16 %v1881
      %v2063 = vunpack.c.l.b16 %v1882
      %v2064 = vunpack.c.l.b16 %v1883
      %v2065 = vunpack.c.h.b16 %v1883
      %v2066 = vunpack.c.l.b16 %v1884
      %v2067 = vunpack.c.l.b16 %v1885
      %v2068 = vunpack.c.h.b16 %v1885
      %v2069 = vunpack.c.l.b16 %v1886
      %v2070 = vunpack.c.l.b16 %v1887
      %v2071 = vunpack.c.h.b16 %v1887
      %v2072 = vunpack.c.l.b16 %v1888
      %v2073 = vunpack.c.l.b16 %v1889
      %v2074 = vunpack.c.h.b16 %v1889
      %v2075 = vunpack.c.l.b16 %v1890
      %v2076 = vunpack.c.l.b16 %v1891
      %v2077 = vunpack.c.h.b16 %v1891
      %v2078 = vunpack.c.l.b16 %v1892
      %v2079 = vunpack.c.l.b16 %v1893
      %v2080 = vunpack.c.h.b16 %v1893
      %v2081 = vunpack.c.l.b16 %v1894
      %v2082 = vpack.c.b16 %v1977, %v1974
      %v2083 = vpack.c.b16 %v1978, %v1975
      %v2084 = vpack.c.b16 %v1979, %v1976
      %v2085 = vpack.c.b16 %v1983, %v1980
      %v2086 = vpack.c.b16 %v1984, %v1981
      %v2087 = vpack.c.b16 %v1985, %v1982
      %v2088 = vpack.c.b16 %v1989, %v1986
      %v2089 = vpack.c.b16 %v1990, %v1987
      %v2090 = vpack.c.b16 %v1991, %v1988
      %v2091 = vpack.c.b16 %v1995, %v1992
      %v2092 = vpack.c.b16 %v1996, %v1993
      %v2093 = vpack.c.b16 %v1997, %v1994
      %v2094 = vpack.c.b16 %v2001, %v1998
      %v2095 = vpack.c.b16 %v2002, %v1999
      %v2096 = vpack.c.b16 %v2003, %v2000
      %v2097 = vpack.c.b16 %v2007, %v2004
      %v2098 = vpack.c.b16 %v2008, %v2005
      %v2099 = vpack.c.b16 %v2009, %v2006
      %v2100 = vpack.c.b16 %v2013, %v2010
      %v2101 = vpack.c.b16 %v2014, %v2011
      %v2102 = vpack.c.b16 %v2015, %v2012
      %v2103 = vpack.c.b16 %v2019, %v2016
      %v2104 = vpack.c.b16 %v2020, %v2017
      %v2105 = vpack.c.b16 %v2021, %v2018
      %v2106 = vpack.c.b16 %v2025, %v2022
      %v2107 = vpack.c.b16 %v2026, %v2023
      %v2108 = vpack.c.b16 %v2027, %v2024
      %v2109 = vpack.c.b16 %v2031, %v2028
      %v2110 = vpack.c.b16 %v2032, %v2029
      %v2111 = vpack.c.b16 %v2033, %v2030
      %v2112 = vpack.c.b16 %v2037, %v2034
      %v2113 = vpack.c.b16 %v2038, %v2035
      %v2114 = vpack.c.b16 %v2039, %v2036
      %v2115 = vpack.c.b16 %v2043, %v2040
      %v2116 = vpack.c.b16 %v2044, %v2041
      %v2117 = vpack.c.b16 %v2045, %v2042
      %v2118 = vpack.c.b16 %v2049, %v2046
      %v2119 = vpack.c.b16 %v2050, %v2047
      %v2120 = vpack.c.b16 %v2051, %v2048
      %v2121 = vpack.c.b16 %v2055, %v2052
      %v2122 = vpack.c.b16 %v2056, %v2053
      %v2123 = vpack.c.b16 %v2057, %v2054
      %v2124 = vpack.c.b16 %v2061, %v2058
      %v2125 = vpack.c.b16 %v2062, %v2059
      %v2126 = vpack.c.b16 %v2063, %v2060
      %v2127 = vpack.c.b16 %v2067, %v2064
      %v2128 = vpack.c.b16 %v2068, %v2065
      %v2129 = vpack.c.b16 %v2069, %v2066
      %v2130 = vpack.c.b16 %v2073, %v2070
      %v2131 = vpack.c.b16 %v2074, %v2071
      %v2132 = vpack.c.b16 %v2075, %v2072
      %v2133 = vpack.c.b16 %v2079, %v2076
      %v2134 = vpack.c.b16 %v2080, %v2077
      %v2135 = vpack.c.b16 %v2081, %v2078
      %v2190 = vsel %vm837, %v1899, 0
      %2192 = vmatpush.bf16.msra.mxu0 %v2103
      %2193 = vmatpush.bf16.msra.mxu0 %v2100
      %2194 = vmatpush.bf16.msra.mxu0 %v2097
      %2195 = vmatpush.bf16.msra.mxu0 %v2094
      %2196 = vmatpush.bf16.msra.mxu0 %v2091
      %2197 = vmatpush.bf16.msra.mxu0 %v2088
      %2198 = vmatpush.bf16.msra.mxu0 %v2085
      %2199 = vmatpush.bf16.msra.mxu0 %v2082
      %2200 = vmatmul.bf16.gmra.mxu0 %v1897
      %v2201 = vpop.f32.mrf.mxu0
      %v2202 = vadd.f32 0.0, %v2201
      %v2203 = vpop.f32.mrf.mxu0
      %2204 = vdwg.mxu0
      %2205 = vmatpush.bf16.msra.mxu0 %v2127
      %2206 = vmatpush.bf16.msra.mxu0 %v2124
      %2207 = vmatpush.bf16.msra.mxu0 %v2121
      %2208 = vmatpush.bf16.msra.mxu0 %v2118
      %2209 = vmatpush.bf16.msra.mxu0 %v2115
      %2210 = vmatpush.bf16.msra.mxu0 %v2112
      %2211 = vmatpush.bf16.msra.mxu0 %v2109
      %2212 = vmatpush.bf16.msra.mxu0 %v2106
      %2213 = vmatmul.bf16.gmra.mxu0 %v1898
      %v2214 = vpop.f32.mrf.mxu0
      %v2215 = vadd.f32 %v2202, %v2214
      %v2216 = vpop.f32.mrf.mxu0
      %2217 = vdwg.mxu0
      %2218 = vmatpush.bf16.msra.mxu0 0
      %2219 = vmatpush.bf16.msra.mxu0 0
      %2220 = vmatpush.bf16.msra.mxu0 0
      %2221 = vmatpush.bf16.msra.mxu0 0
      %2222 = vmatpush.bf16.msra.mxu0 0
      %2223 = vmatpush.bf16.msra.mxu0 0
      %2224 = vmatpush.bf16.msra.mxu0 %v2133
      %2225 = vmatpush.bf16.msra.mxu0 %v2130
      %2226 = vmatmul.bf16.gmra.mxu0 %v2190
      %v2227 = vpop.f32.mrf.mxu0
      %v2228 = vadd.f32 %v2215, %v2227
      %v2229 = vpop.f32.mrf.mxu0
      %2230 = vdwg.mxu0
      %2231 = vmatpush.bf16.msra.mxu0 %v2104
      %2232 = vmatpush.bf16.msra.mxu0 %v2101
      %2233 = vmatpush.bf16.msra.mxu0 %v2098
      %2234 = vmatpush.bf16.msra.mxu0 %v2095
      %2235 = vmatpush.bf16.msra.mxu0 %v2092
      %2236 = vmatpush.bf16.msra.mxu0 %v2089
      %2237 = vmatpush.bf16.msra.mxu0 %v2086
      %2238 = vmatpush.bf16.msra.mxu0 %v2083
      %2239 = vmatmul.bf16.gmra.mxu0 %v1897
      %v2240 = vpop.f32.mrf.mxu0
      %v2241 = vadd.f32 0.0, %v2240
      %v2242 = vpop.f32.mrf.mxu0
      %2243 = vdwg.mxu0
      %2244 = vmatpush.bf16.msra.mxu0 %v2128
      %2245 = vmatpush.bf16.msra.mxu0 %v2125
      %2246 = vmatpush.bf16.msra.mxu0 %v2122
      %2247 = vmatpush.bf16.msra.mxu0 %v2119
      %2248 = vmatpush.bf16.msra.mxu0 %v2116
      %2249 = vmatpush.bf16.msra.mxu0 %v2113
      %2250 = vmatpush.bf16.msra.mxu0 %v2110
      %2251 = vmatpush.bf16.msra.mxu0 %v2107
      %2252 = vmatmul.bf16.gmra.mxu0 %v1898
      %v2253 = vpop.f32.mrf.mxu0
      %v2254 = vadd.f32 %v2241, %v2253
      %v2255 = vpop.f32.mrf.mxu0
      %2256 = vdwg.mxu0
      %2257 = vmatpush.bf16.msra.mxu0 0
      %2258 = vmatpush.bf16.msra.mxu0 0
      %2259 = vmatpush.bf16.msra.mxu0 0
      %2260 = vmatpush.bf16.msra.mxu0 0
      %2261 = vmatpush.bf16.msra.mxu0 0
      %2262 = vmatpush.bf16.msra.mxu0 0
      %2263 = vmatpush.bf16.msra.mxu0 %v2134
      %2264 = vmatpush.bf16.msra.mxu0 %v2131
      %2265 = vmatmul.bf16.gmra.mxu0 %v2190
      %v2266 = vpop.f32.mrf.mxu0
      %v2267 = vadd.f32 %v2254, %v2266
      %v2268 = vpop.f32.mrf.mxu0
      %2269 = vdwg.mxu0
      %2270 = vmatpush.bf16.msra.mxu0 %v2105
      %2271 = vmatpush.bf16.msra.mxu0 %v2102
      %2272 = vmatpush.bf16.msra.mxu0 %v2099
      %2273 = vmatpush.bf16.msra.mxu0 %v2096
      %2274 = vmatpush.bf16.msra.mxu0 %v2093
      %2275 = vmatpush.bf16.msra.mxu0 %v2090
      %2276 = vmatpush.bf16.msra.mxu0 %v2087
      %2277 = vmatpush.bf16.msra.mxu0 %v2084
      %2278 = vmatmul.bf16.gmra.mxu0 %v1897
      %v2279 = vpop.f32.mrf.mxu0
      %v2280 = vadd.f32 0.0, %v2279
      %v2281 = vpop.f32.mrf.mxu0
      %2282 = vdwg.mxu0
      %2283 = vmatpush.bf16.msra.mxu0 %v2129
      %2284 = vmatpush.bf16.msra.mxu0 %v2126
      %2285 = vmatpush.bf16.msra.mxu0 %v2123
      %2286 = vmatpush.bf16.msra.mxu0 %v2120
      %2287 = vmatpush.bf16.msra.mxu0 %v2117
      %2288 = vmatpush.bf16.msra.mxu0 %v2114
      %2289 = vmatpush.bf16.msra.mxu0 %v2111
      %2290 = vmatpush.bf16.msra.mxu0 %v2108
      %2291 = vmatmul.bf16.gmra.mxu0 %v1898
      %v2292 = vpop.f32.mrf.mxu0
      %v2293 = vadd.f32 %v2280, %v2292
      %v2294 = vpop.f32.mrf.mxu0
      %2295 = vdwg.mxu0
      %2296 = vmatpush.bf16.msra.mxu0 0
      %2297 = vmatpush.bf16.msra.mxu0 0
      %2298 = vmatpush.bf16.msra.mxu0 0
      %2299 = vmatpush.bf16.msra.mxu0 0
      %2300 = vmatpush.bf16.msra.mxu0 0
      %2301 = vmatpush.bf16.msra.mxu0 0
      %2302 = vmatpush.bf16.msra.mxu0 %v2135
      %2303 = vmatpush.bf16.msra.mxu0 %v2132
      %2304 = vmatmul.bf16.gmra.mxu0 %v2190
      %v2305 = vpop.f32.mrf.mxu0
      %v2306 = vadd.f32 %v2293, %v2305
      %v2307 = vpop.f32.mrf.mxu0
      %2308 = vdwg.mxu0
      %v2311 = vrot.slane %v2267, 4
      %v2312 = vsel %vm1124, %v2228, %v2311
      %2314 = vst [vmem:[%s389] sm:$0xff] %v2312
      %2315 = vst [vmem:[%s389 + $0x8] sm:$0xf] %v2306
      %p2316 = scmp.lt.s32.totalorder %s20, 1
      %s2317 = scalar_select %p2316, %s20, 1
      %s2318 = smul.addr %s2317, 3
      %s2319 = smul.addr %s2318, 4
      %s2320 = scalar_lea.vmem %s9, %s2319
      // Predicated region
      $region57: #{unet_forward.1} parent=55 // pred_check
        %p2321 = pneg %p247
      $region58: #{unet_forward.1} parent=55 // pred_check_branch
        %2323 = sbr.rel (%p2321) target = $region60
      $region59: #{unet_forward.1} parent=55 // pred_region
        _
      $region60: #{unet_forward.1} parent=55 // pred_fallthru
        _
    $region56: #{unet_forward.1} parent=5 // pred_fallthru
      _
    %p2324 = scmp.le.s32.totalorder 2, %s15
    // Predicated region
    $region61: #{unet_forward.1} parent=5 // pred_check
      %p2325 = pneg %p2324
    $region62: #{unet_forward.1} parent=5 // pred_check_branch
      %2327 = sbr.rel (%p2325) target = $region64
    $region63: #{unet_forward.1} parent=5 // pred_region
      %s2328 = ssub.s32 %s15, 2
      // Predicated region
      $region65: #{unet_forward.1} parent=63 // pred_check
        %p2329 = pneg %p253
      $region66: #{unet_forward.1} parent=63 // pred_check_branch
        %2331 = sbr.rel (%p2329) target = $region68
      $region67: #{unet_forward.1} parent=63 // pred_region
        %p2332 = scmp.lt.s32.totalorder %s21, 1
        %s2333 = scalar_select %p2332, %s21, 1
        %s2334 = smul.addr %s2333, 3
        %s2335 = smul.addr %s2334, 4
        %s2336 = scalar_lea.vmem %s9, %s2335
      $region68: #{unet_forward.1} parent=63 // pred_fallthru
        _
    $region64: #{unet_forward.1} parent=5 // pred_fallthru
      _
  $region6: #{unet_forward.1} parent=0 // loop_footer
    %s19 = sadd.s32 1, %s15
  $region7: #{unet_forward.1} parent=0 // loop_footer_branch
    %14 = sbr.rel target = $region3
  $region8: #{unet_forward.1} parent=0 // loop_exit
    _

</llo_original>
